<compile_context>
chip_gen: v5e
topology: v5e:2x2
jax: 0.10.0
libtpu: 0.0.40
codegen_flags: <defaults>
</compile_context>

<pallas_src>
import jax
import jax.numpy as jnp
from jax.experimental import pallas as pl
from jax.experimental.pallas import tpu as pltpu


def _round_up(a: int, b: int) -> int:
    return (a + b - 1) // b * b


def _pick_batch_tile(n: int) -> int:
    """Batch tile: multiple of 8 sublanes, >=4 grid steps for large N, cap 256/512."""
    cap = 512 if n >= 2048 else 256
    tn = _round_up(max(1, -(-n // 4)), 8)          # cdiv(n, 4) rounded to sublane
    return max(8, min(tn, cap, _round_up(n, 8)))


# ----------------------------------------------------------------------------
# Kernel: two resident-weight matmuls + shift/ReLU epilogue per batch tile.
# ----------------------------------------------------------------------------
def _policy_head_kernel(x_ref, wexp_ref, shift_ref, wfc_ref, bfc_ref, out_ref):
    # x_ref:     [TN, C*HW]    lane-dense batch tile (free reshape of NCHW)
    # wexp_ref:  [C*HW, P*HW]  BN-scale-folded, block-diag expanded 1x1 conv weight
    # shift_ref: [1, P*HW]     folded BN shift (includes conv bias), channel-major order
    # wfc_ref:   [P*HW, OBB]   FC weight (PyTorch flatten row order, transposed)
    # bfc_ref:   [1, OBB]      FC bias
    # out_ref:   [TN, OBB]
    x = x_ref[...].astype(wexp_ref.dtype)

    # 1x1 conv (+BN scale) as one dense MXU matmul, f32 accumulation.
    feat = jnp.dot(x, wexp_ref[...], preferred_element_type=jnp.float32)  # [TN, P*HW]
    feat = jnp.maximum(feat + shift_ref[...], 0.0)                        # BN shift + ReLU

    # Fully-connected layer on the MXU, f32 accumulation.
    out = jnp.dot(feat.astype(wfc_ref.dtype), wfc_ref[...],
                  preferred_element_type=jnp.float32)                     # [TN, OBB]
    out_ref[...] = (out + bfc_ref[...]).astype(out_ref.dtype)


# ----------------------------------------------------------------------------
# One-time parameter folding (hoisted out of the hot path).
# ----------------------------------------------------------------------------
def prepare_policy_head_params(params, board_size, num_out_channels, *,
                               eps=1e-5, weights_dtype=jnp.bfloat16):
    """Fold conv/BN/FC params into the kernel operands. Call once at load time."""
    conv_w = params["conv_w"]          # [P, C, 1, 1]
    conv_b = params["conv_b"]          # [P]
    gamma = params["bn_gamma"]         # [P]
    beta = params["bn_beta"]           # [P]
    r_mean = params["bn_mean"]         # [P]
    r_var = params["bn_var"]           # [P]
    fc_w = params["fc_w"]              # [O*B*B, P*B*B]
    fc_b = params["fc_b"]              # [O*B*B]

    P, C = conv_w.shape[0], conv_w.shape[1]
    HW = board_size * board_size
    OBB = num_out_channels * HW
    assert fc_w.shape == (OBB, P * HW), fc_w.shape

    scale = gamma / jnp.sqrt(r_var + eps)                      # [P]
    shift = (conv_b - r_mean) * scale + beta                   # [P]

    # BN scale folded into the conv weight (conv is linear): sw[p,c] = scale[p]*wc[p,c]
    sw = (scale[:, None] * conv_w.reshape(P, C)).astype(jnp.float32)
    # Expanded block-diagonal 1x1-conv weight:
    #   Wexp[c*HW + hw', p*HW + hw] = sw[p, c] * delta(hw' == hw)
    eye = jnp.eye(HW, dtype=jnp.float32)
    wexp = jnp.einsum("pc,ij->cipj", sw, eye).reshape(C * HW, P * HW).astype(weights_dtype)

    # Shift in PyTorch's flatten order (feature k = p*HW + hw -> channel p = k // HW).
    shift_vec = jnp.repeat(shift, HW).reshape(1, P * HW).astype(jnp.float32)

    wfc = jnp.transpose(fc_w).astype(weights_dtype)            # [P*HW, OBB]
    bfc = fc_b.reshape(1, OBB).astype(jnp.float32)

    return {"wexp": wexp, "shift": shift_vec, "wfc": wfc, "bfc": bfc,
            "dims": (P, C, HW, OBB)}


# ----------------------------------------------------------------------------
# Wrapper: batch tiling + pallas_call.
# ----------------------------------------------------------------------------
def policy_head_pallas(x, prepared, board_size, num_out_channels, *, batch_tile=None):
    """x: NCHW [N, C, H, W] (f32 or bf16). Returns [N, num_out_channels, B, B] f32."""
    N, C, H, W = x.shape
    HW = H * W
    CHW = C * HW
    wexp, shift_vec, wfc, bfc = prepared["wexp"], prepared["shift"], prepared["wfc"], prepared["bfc"]
    PHW = wexp.shape[1]
    OBB = wfc.shape[1]
    assert wexp.shape[0] == CHW, (wexp.shape, CHW)
    assert OBB == num_out_channels * board_size * board_size

    TN = _round_up(batch_tile, 8) if batch_tile is not None else _pick_batch_tile(N)
    N_pad = _round_up(N, TN)

    # Free reshape of NCHW to a lane-dense [N, C*HW] slab; pad batch to the tile.
    x2d = x.reshape(N, CHW)
    if N_pad != N:
        x2d = jnp.pad(x2d, ((0, N_pad - N), (0, 0)))

    # VMEM footprint estimate (double-buffered x/out tiles + resident weights).
    w_bytes = jnp.dtype(wexp.dtype).itemsize
    vmem_est = (2 * TN * CHW * 4 + 2 * TN * OBB * 4
                + 2 * (CHW * PHW + PHW * OBB) * w_bytes + 2 * (PHW + OBB) * 4)
    cp_kwargs = {}
    if vmem_est > (12 << 20):   # only needed when tiles get big (v5e default: 16 MiB)
        cp_kwargs["vmem_limit_bytes"] = int(min(2 * vmem_est, 64 << 20))

    out = pl.pallas_call(
        _policy_head_kernel,
        out_shape=jax.ShapeDtypeStruct((N_pad, OBB), jnp.float32),
        grid_spec=pltpu.PrefetchScalarGridSpec(
            num_scalar_prefetch=0,
            grid=(N_pad // TN,),
            in_specs=[
                pl.BlockSpec((TN, CHW), lambda i: (i, 0)),       # x tile (lane-dense)
                pl.BlockSpec((CHW, PHW), lambda i: (0, 0)),      # expanded conv weight
                pl.BlockSpec((1, PHW), lambda i: (0, 0)),        # folded BN shift
                pl.BlockSpec((PHW, OBB), lambda i: (0, 0)),      # fc weight
                pl.BlockSpec((1, OBB), lambda i: (0, 0)),        # fc bias
            ],
            out_specs=pl.BlockSpec((TN, OBB), lambda i: (i, 0)),
        ),
        compiler_params=pltpu.CompilerParams(
            dimension_semantics=("parallel",), **cp_kwargs),
    )(x2d, wexp, shift_vec, wfc, bfc)

    out = out[:N]   # padded rows compute garbage and are sliced off (harmless)
    return out.reshape(N, num_out_channels, board_size, board_size)


# ----------------------------------------------------------------------------
# Pure-JAX reference (PyTorch semantics, BN in eval mode).
# ----------------------------------------------------------------------------
def _reference(x, params, board_size, num_out_channels, eps=1e-5):
    N, C, H, W = x.shape
    P = params["conv_w"].shape[0]
    y = jnp.einsum("nchw,pc->nphw", x, params["conv_w"].reshape(P, C))
    y = y + params["conv_b"][None, :, None, None]
    s = params["bn_gamma"] / jnp.sqrt(params["bn_var"] + eps)
    y = (y - params["bn_mean"][None, :, None, None]) * s[None, :, None, None]
    y = y + params["bn_beta"][None, :, None, None]
    y = jnp.maximum(y, 0.0)
    flat = y.reshape(N, P * H * W)                              # channel-major flatten
    out = flat @ params["fc_w"].T + params["fc_b"]
    return out.reshape(N, num_out_channels, board_size, board_size)


if __name__ == "__main__":
    # Small deterministic config consistent with the module.
    board_size = 8
    num_filters = 32
    num_policy_filters = 4
    num_out_channels = 2
    batch = 2

    key = jax.random.PRNGKey(0)
    ks = jax.random.split(key, 8)
    P, C, B, O = num_policy_filters, num_filters, board_size, num_out_channels
    params = {
        "conv_w": 0.1 * jax.random.normal(ks[0], (P, C, 1, 1), jnp.float32),
        "conv_b": 0.1 * jax.random.normal(ks[1], (P,), jnp.float32),
        "bn_gamma": 1.0 + 0.1 * jax.random.normal(ks[2], (P,), jnp.float32),
        "bn_beta": 0.1 * jax.random.normal(ks[3], (P,), jnp.float32),
        "bn_mean": 0.1 * jax.random.normal(ks[4], (P,), jnp.float32),
        "bn_var": jnp.abs(1.0 + 0.1 * jax.random.normal(ks[5], (P,), jnp.float32)),
        "fc_w": 0.05 * jax.random.normal(ks[6], (O * B * B, P * B * B), jnp.float32),
        "fc_b": 0.05 * jax.random.normal(ks[7], (O * B * B,), jnp.float32),
    }

    # Parameter folding hoisted out of the hot path (done once).
    prep_f32 = prepare_policy_head_params(params, board_size, num_out_channels,
                                          weights_dtype=jnp.float32)
    prep_bf16 = prepare_policy_head_params(params, board_size, num_out_channels)  # bf16 default

    # --- test 1: small batch, f32 weights (single grid step, padded to TN=8) ---
    x = jax.random.normal(jax.random.PRNGKey(1), (batch, C, B, B), jnp.float32)
    ref = _reference(x, params, board_size, num_out_channels)
    out = policy_head_pallas(x, prep_f32, board_size, num_out_channels)
    out = jax.block_until_ready(out)
    assert out.shape == (batch, O, B, B), out.shape
    assert jnp.allclose(out, ref, atol=1e-4, rtol=1e-4), float(jnp.max(jnp.abs(out - ref)))

    # --- test 2: default bf16 weights (MXU bf16 path on v5e/v6e/v7x, f32 acc) ---
    out_bf = policy_head_pallas(x, prep_bf16, board_size, num_out_channels)
    out_bf = jax.block_until_ready(out_bf)
    assert jnp.allclose(out_bf, ref, atol=5e-2, rtol=1e-1), float(jnp.max(jnp.abs(out_bf - ref)))

    # --- test 3: larger batch with explicit small tile (multiple grid steps + padding) ---
    x2 = jax.random.normal(jax.random.PRNGKey(2), (20, C, B, B), jnp.float32)
    ref2 = _reference(x2, params, board_size, num_out_channels)
    out2 = policy_head_pallas(x2, prep_f32, board_size, num_out_channels, batch_tile=8)
    out2 = jax.block_until_ready(out2)
    assert out2.shape == (20, O, B, B), out2.shape
    assert jnp.allclose(out2, ref2, atol=1e-4, rtol=1e-4), float(jnp.max(jnp.abs(out2 - ref2)))

    # --- test 4: bigger batch exercising the tile heuristic (>=4 grid steps + padding) ---
    x3 = jax.random.normal(jax.random.PRNGKey(3), (300, C, B, B), jnp.float32)
    ref3 = _reference(x3, params, board_size, num_out_channels)
    out3 = policy_head_pallas(x3, prep_f32, board_size, num_out_channels)
    out3 = jax.block_until_ready(out3)
    assert out3.shape == (300, O, B, B), out3.shape
    assert jnp.allclose(out3, ref3, atol=1e-4, rtol=1e-4), float(jnp.max(jnp.abs(out3 - ref3)))

    print("KERNEL_OK")
</pallas_src>

<mosaic_0001>
module attributes {stable_mosaic.version = 11 : i64} {
  func.func @_policy_head_kernel(%arg0: i32, %arg1: memref<8x2048xf32, #tpu.memory_space<vmem>>, %arg2: memref<2048x256xf32, #tpu.memory_space<vmem>>, %arg3: memref<1x256xf32, #tpu.memory_space<vmem>>, %arg4: memref<256x128xf32, #tpu.memory_space<vmem>>, %arg5: memref<1x128xf32, #tpu.memory_space<vmem>>, %arg6: memref<8x128xf32, #tpu.memory_space<vmem>>) attributes {dimension_semantics = [#tpu.dimension_semantics<parallel>], iteration_bounds = array<i64: 1>, scalar_prefetch = 0 : i64, scratch_operands = 0 : i64, tpu.core_type = #tpu.core_type<tc>, window_params = [{transform_indices = @transform_0, window_bounds = array<i64: 8, 2048>}, {pipeline_mode = #tpu.pipeline_mode<synchronous>, transform_indices = @transform_1, window_bounds = array<i64: 2048, 256>}, {pipeline_mode = #tpu.pipeline_mode<synchronous>, transform_indices = @transform_2, window_bounds = array<i64: 1, 256>}, {pipeline_mode = #tpu.pipeline_mode<synchronous>, transform_indices = @transform_3, window_bounds = array<i64: 256, 128>}, {pipeline_mode = #tpu.pipeline_mode<synchronous>, transform_indices = @transform_4, window_bounds = array<i64: 1, 128>}, {transform_indices = @transform_5, window_bounds = array<i64: 8, 128>}]} {
    %c0 = arith.constant 0 : index
    %c0_0 = arith.constant 0 : index
    %0 = vector.load %arg1[%c0, %c0_0] : memref<8x2048xf32, #tpu.memory_space<vmem>>, vector<8x2048xf32>
    %c0_1 = arith.constant 0 : index
    %c0_2 = arith.constant 0 : index
    %1 = vector.load %arg2[%c0_1, %c0_2] : memref<2048x256xf32, #tpu.memory_space<vmem>>, vector<2048x256xf32>
    %cst = arith.constant dense<0.000000e+00> : vector<8x256xf32>
    %2 = tpu.matmul %0, %1, %cst {dimension_numbers = #tpu.dot_dimension_numbers<[1], [0], [0], [1], [0, 0, 1, 1], [], []>} : vector<8x2048xf32>, vector<2048x256xf32>, vector<8x256xf32> -> vector<8x256xf32>
    %c0_3 = arith.constant 0 : index
    %c0_4 = arith.constant 0 : index
    %3 = vector.load %arg3[%c0_3, %c0_4] : memref<1x256xf32, #tpu.memory_space<vmem>>, vector<1x256xf32>
    %4 = vector.broadcast %3 : vector<1x256xf32> to vector<8x256xf32>
    %5 = arith.addf %2, %4 : vector<8x256xf32>
    %cst_5 = arith.constant 0.000000e+00 : f32
    %6 = vector.broadcast %cst_5 : f32 to vector<8x256xf32>
    %7 = arith.maximumf %5, %6 : vector<8x256xf32>
    %c0_6 = arith.constant 0 : index
    %c0_7 = arith.constant 0 : index
    %8 = vector.load %arg4[%c0_6, %c0_7] : memref<256x128xf32, #tpu.memory_space<vmem>>, vector<256x128xf32>
    %cst_8 = arith.constant dense<0.000000e+00> : vector<8x128xf32>
    %9 = tpu.matmul %7, %8, %cst_8 {dimension_numbers = #tpu.dot_dimension_numbers<[1], [0], [0], [1], [0, 0, 1, 1], [], []>} : vector<8x256xf32>, vector<256x128xf32>, vector<8x128xf32> -> vector<8x128xf32>
    %c0_9 = arith.constant 0 : index
    %c0_10 = arith.constant 0 : index
    %10 = vector.load %arg5[%c0_9, %c0_10] : memref<1x128xf32, #tpu.memory_space<vmem>>, vector<1x128xf32>
    %11 = vector.broadcast %10 : vector<1x128xf32> to vector<8x128xf32>
    %12 = arith.addf %9, %11 : vector<8x128xf32>
    %c0_11 = arith.constant 0 : index
    %c0_12 = arith.constant 0 : index
    %13 = vector.load %arg6[%c0_11, %c0_12] : memref<8x128xf32, #tpu.memory_space<vmem>>, vector<8x128xf32>
    tpu.vector_store %arg6[%c0_11, %c0_12], %12 {strides = array<i32>} : memref<8x128xf32, #tpu.memory_space<vmem>>, vector<8x128xf32>,
    return
  }
  func.func @transform_0(%arg0: i32) -> (i32, i32) {
    %c0_i32 = arith.constant 0 : i32
    %c0_i32_0 = arith.constant 0 : i32
    return %arg0, %c0_i32 : i32, i32
  }
  func.func @transform_1(%arg0: i32) -> (i32, i32) {
    %c0_i32 = arith.constant 0 : i32
    %c0_i32_0 = arith.constant 0 : i32
    %c0_i32_1 = arith.constant 0 : i32
    return %c0_i32, %c0_i32_0 : i32, i32
  }
  func.func @transform_2(%arg0: i32) -> (i32, i32) {
    %c0_i32 = arith.constant 0 : i32
    %c0_i32_0 = arith.constant 0 : i32
    %c0_i32_1 = arith.constant 0 : i32
    return %c0_i32, %c0_i32_0 : i32, i32
  }
  func.func @transform_3(%arg0: i32) -> (i32, i32) {
    %c0_i32 = arith.constant 0 : i32
    %c0_i32_0 = arith.constant 0 : i32
    %c0_i32_1 = arith.constant 0 : i32
    return %c0_i32, %c0_i32_0 : i32, i32
  }
  func.func @transform_4(%arg0: i32) -> (i32, i32) {
    %c0_i32 = arith.constant 0 : i32
    %c0_i32_0 = arith.constant 0 : i32
    %c0_i32_1 = arith.constant 0 : i32
    return %c0_i32, %c0_i32_0 : i32, i32
  }
  func.func @transform_5(%arg0: i32) -> (i32, i32) {
    %c0_i32 = arith.constant 0 : i32
    %c0_i32_0 = arith.constant 0 : i32
    return %arg0, %c0_i32 : i32, i32
  }
}

</mosaic_0001>

<llo_original>
// kernel: tpu_custom_call.1
$region0: #{tpu_custom_call.1}
  #allocation0 [shape = 'u32[]', space=smem, size = 0x4, offset = 0x4, fixed_abs, tag = 'smem constant byte address 0x4 - core index']
  #allocation1 [shape = 'u32[72,128]{1,0:T(1,128)}', space=vmem, size = 0x9000, scoped, tag = 'internal scratch']
  %s0 = inlined_call_operand.hbm [shape: f32[8,2048], index: 0, kind: input, shape index: {}]
  %s1 = inlined_call_operand.hbm [shape: f32[2048,256], index: 1, kind: input, shape index: {}]
  %s2 = inlined_call_operand.hbm [shape: f32[1,256], index: 2, kind: input, shape index: {}]
  %s3 = inlined_call_operand.hbm [shape: f32[256,128], index: 3, kind: input, shape index: {}]
  %s4 = inlined_call_operand.hbm [shape: f32[1,128], index: 4, kind: input, shape index: {}]
  %s5 = inlined_call_operand.hbm [shape: f32[8,128], index: 5, kind: output, shape index: {}]
  %s6 = sld [smem:[#allocation0]]
  $region50: #{tpu_custom_call.1} parent=0
    _
  %s8 = ssub.s32 1, %s6
  %s9 = scalar_select 0, %s8, %s6
  $region1: #{tpu_custom_call.1} parent=0
    #allocation2 [shape = 'u8[65536]{0}', space=vmem, size = 0x10000, scoped, tag = 'input window, operand 0, single buffered']
    #allocation3 [shape = 's32[1]{0}', space=sflag, size = 0x4, scoped, tag = 'scoped memory for tpu_custom_call.1']
    #allocation4 [shape = 's32[1]{0}', space=sflag, size = 0x4, scoped, tag = 'scoped memory for tpu_custom_call.1']
    #allocation5 [shape = 'u8[2097152]{0}', space=vmem, size = 0x200000, scoped, tag = 'input window, operand 1, single buffered']
    #allocation6 [shape = 's32[1]{0}', space=sflag, size = 0x4, scoped, tag = 'scoped memory for tpu_custom_call.1']
    #allocation7 [shape = 'u8[1024]{0}', space=vmem, size = 0x400, scoped, tag = 'input window, operand 2, single buffered']
    #allocation8 [shape = 'u8[131072]{0}', space=vmem, size = 0x20000, scoped, tag = 'input window, operand 3, single buffered']
    #allocation9 [shape = 's32[1]{0}', space=sflag, size = 0x4, scoped, tag = 'scoped memory for tpu_custom_call.1']
    #allocation10 [shape = 'u8[512]{0}', space=vmem, size = 0x400, scoped, tag = 'input window, operand 4, single buffered']
    #allocation11 [shape = 'u8[4096]{0}', space=vmem, size = 0x1000, scoped, tag = 'output window, operand 0, single buffered']
    %10 = vsyncpa [#allocation3], 0
    %11 = vsyncpa [#allocation6], 0
    %12 = vsyncpa [#allocation9], 0
    %13 = vsyncpa [#allocation4], 0
    // Predicated region
    $region2: #{tpu_custom_call.1} parent=1 // pred_check
      _
    $region3: #{tpu_custom_call.1} parent=1 // pred_check_branch
      %15 = sbr.rel (0) target = $region5
    $region4: #{tpu_custom_call.1} parent=1 // pred_region
      %17 = vsyncadd [#allocation3], 0
      %s19 = sshll.u32 %s0, 4
      %s20 = int_to_ptr.hbm [resolvable:$true] %s19
      %s21 = sshll.u32 [#allocation2], 4
      %s22 = int_to_ptr.vmem [resolvable:$true] %s21
      %24 = dma.hbm_to_vmem [thread:$0]  %s20, 2048, %s22, [#allocation3]
    $region5: #{tpu_custom_call.1} parent=1 // pred_fallthru
      _
    // Predicated region
    $region6: #{tpu_custom_call.1} parent=1 // pred_check
      _
    $region7: #{tpu_custom_call.1} parent=1 // pred_check_branch
      %26 = sbr.rel (0) target = $region9
    $region8: #{tpu_custom_call.1} parent=1 // pred_region
      %28 = vsyncadd [#allocation6], 0
      %s29 = sshll.u32 %s1, 4
      %s30 = int_to_ptr.hbm [resolvable:$true] %s29
      %s31 = sshll.u32 [#allocation5], 4
      %s32 = int_to_ptr.vmem [resolvable:$true] %s31
      %37 = dma.hbm_to_vmem [thread:$0]  %s30, 65536, %s32, [#allocation6], 256, 256, 16
    $region9: #{tpu_custom_call.1} parent=1 // pred_fallthru
      _
    // Predicated region
    $region10: #{tpu_custom_call.1} parent=1 // pred_check
      _
    $region11: #{tpu_custom_call.1} parent=1 // pred_check_branch
      %39 = sbr.rel (0) target = $region13
    $region12: #{tpu_custom_call.1} parent=1 // pred_region
      %41 = vsyncadd [#allocation6], 0
      %s43 = sshll.u32 %s2, 4
      %s44 = int_to_ptr.hbm [resolvable:$true] %s43
      %s45 = sshll.u32 [#allocation7], 4
      %s46 = int_to_ptr.vmem [resolvable:$true] %s45
      %48 = dma.hbm_to_vmem [thread:$0]  %s44, 32, %s46, [#allocation6]
    $region13: #{tpu_custom_call.1} parent=1 // pred_fallthru
      _
    // Predicated region
    $region14: #{tpu_custom_call.1} parent=1 // pred_check
      _
    $region15: #{tpu_custom_call.1} parent=1 // pred_check_branch
      %50 = sbr.rel (0) target = $region17
    $region16: #{tpu_custom_call.1} parent=1 // pred_region
      %52 = vsyncadd [#allocation9], 0
      %s53 = sshll.u32 %s3, 4
      %s54 = int_to_ptr.hbm [resolvable:$true] %s53
      %s55 = sshll.u32 [#allocation8], 4
      %s56 = int_to_ptr.vmem [resolvable:$true] %s55
      %61 = dma.hbm_to_vmem [thread:$0]  %s54, 4096, %s56, [#allocation9], 128, 128, 8
    $region17: #{tpu_custom_call.1} parent=1 // pred_fallthru
      _
    // Predicated region
    $region18: #{tpu_custom_call.1} parent=1 // pred_check
      _
    $region19: #{tpu_custom_call.1} parent=1 // pred_check_branch
      %63 = sbr.rel (0) target = $region21
    $region20: #{tpu_custom_call.1} parent=1 // pred_region
      %65 = vsyncadd [#allocation9], 0
      %s67 = sshll.u32 %s4, 4
      %s68 = int_to_ptr.hbm [resolvable:$true] %s67
      %s69 = sshll.u32 [#allocation10], 4
      %s70 = int_to_ptr.vmem [resolvable:$true] %s69
      %72 = dma.hbm_to_vmem [thread:$0]  %s68, 16, %s70, [#allocation9]
    $region21: #{tpu_custom_call.1} parent=1 // pred_fallthru
      _
    // Predicated region
    $region22: #{tpu_custom_call.1} parent=1 // pred_check
      _
    $region23: #{tpu_custom_call.1} parent=1 // pred_check_branch
      %74 = sbr.rel (0) target = $region25
    $region24: #{tpu_custom_call.1} parent=1 // pred_region
      %76 = dma.done [#allocation3], 2048
    $region25: #{tpu_custom_call.1} parent=1 // pred_fallthru
      _
    // Predicated region
    $region26: #{tpu_custom_call.1} parent=1 // pred_check
      _
    $region27: #{tpu_custom_call.1} parent=1 // pred_check_branch
      %78 = sbr.rel (0) target = $region29
    $region28: #{tpu_custom_call.1} parent=1 // pred_region
      %80 = dma.done [#allocation6], 65536
    $region29: #{tpu_custom_call.1} parent=1 // pred_fallthru
      _
    // Predicated region
    $region30: #{tpu_custom_call.1} parent=1 // pred_check
      _
    $region31: #{tpu_custom_call.1} parent=1 // pred_check_branch
      %82 = sbr.rel (0) target = $region33
    $region32: #{tpu_custom_call.1} parent=1 // pred_region
      %84 = dma.done [#allocation6], 32
    $region33: #{tpu_custom_call.1} parent=1 // pred_fallthru
      _
    // Predicated region
    $region34: #{tpu_custom_call.1} parent=1 // pred_check
      _
    $region35: #{tpu_custom_call.1} parent=1 // pred_check_branch
      %86 = sbr.rel (0) target = $region37
    $region36: #{tpu_custom_call.1} parent=1 // pred_region
      %88 = dma.done [#allocation9], 4096
    $region37: #{tpu_custom_call.1} parent=1 // pred_fallthru
      _
    // Predicated region
    $region38: #{tpu_custom_call.1} parent=1 // pred_check
      _
    $region39: #{tpu_custom_call.1} parent=1 // pred_check_branch
      %90 = sbr.rel (0) target = $region41
    $region40: #{tpu_custom_call.1} parent=1 // pred_region
      %92 = dma.done [#allocation9], 16
    $region41: #{tpu_custom_call.1} parent=1 // pred_fallthru
      _
    %v93 = vld [vmem:[#allocation2] sm:$0xff]
    %v94 = vld [vmem:[#allocation2 + $0x8] sm:$0xff]
    %v95 = vld [vmem:[#allocation2 + $0x10] sm:$0xff]
    %v96 = vld [vmem:[#allocation2 + $0x18] sm:$0xff]
    %v97 = vld [vmem:[#allocation2 + $0x20] sm:$0xff]
    %v98 = vld [vmem:[#allocation2 + $0x28] sm:$0xff]
    %v99 = vld [vmem:[#allocation2 + $0x30] sm:$0xff]
    %v100 = vld [vmem:[#allocation2 + $0x38] sm:$0xff]
    %v101 = vld [vmem:[#allocation2 + $0x40] sm:$0xff]
    %v102 = vld [vmem:[#allocation2 + $0x48] sm:$0xff]
    %v103 = vld [vmem:[#allocation2 + $0x50] sm:$0xff]
    %v104 = vld [vmem:[#allocation2 + $0x58] sm:$0xff]
    %v105 = vld [vmem:[#allocation2 + $0x60] sm:$0xff]
    %v106 = vld [vmem:[#allocation2 + $0x68] sm:$0xff]
    %v107 = vld [vmem:[#allocation2 + $0x70] sm:$0xff]
    %v108 = vld [vmem:[#allocation2 + $0x78] sm:$0xff]
    %v109 = vld [vmem:[#allocation5] sm:$0xff]
    %v110 = vld [vmem:[#allocation5 + $0x8] sm:$0xff]
    %v111 = vld [vmem:[#allocation5 + $0x10] sm:$0xff]
    %v112 = vld [vmem:[#allocation5 + $0x18] sm:$0xff]
    %v113 = vld [vmem:[#allocation5 + $0x20] sm:$0xff]
    %v114 = vld [vmem:[#allocation5 + $0x28] sm:$0xff]
    %v115 = vld [vmem:[#allocation5 + $0x30] sm:$0xff]
    %v116 = vld [vmem:[#allocation5 + $0x38] sm:$0xff]
    %v117 = vld [vmem:[#allocation5 + $0x40] sm:$0xff]
    %v118 = vld [vmem:[#allocation5 + $0x48] sm:$0xff]
    %v119 = vld [vmem:[#allocation5 + $0x50] sm:$0xff]
    %v120 = vld [vmem:[#allocation5 + $0x58] sm:$0xff]
    %v121 = vld [vmem:[#allocation5 + $0x60] sm:$0xff]
    %v122 = vld [vmem:[#allocation5 + $0x68] sm:$0xff]
    %v123 = vld [vmem:[#allocation5 + $0x70] sm:$0xff]
    %v124 = vld [vmem:[#allocation5 + $0x78] sm:$0xff]
    %v125 = vld [vmem:[#allocation5 + $0x80] sm:$0xff]
    %v126 = vld [vmem:[#allocation5 + $0x88] sm:$0xff]
    %v127 = vld [vmem:[#allocation5 + $0x90] sm:$0xff]
    %v128 = vld [vmem:[#allocation5 + $0x98] sm:$0xff]
    %v129 = vld [vmem:[#allocation5 + $0xa0] sm:$0xff]
    %v130 = vld [vmem:[#allocation5 + $0xa8] sm:$0xff]
    %v131 = vld [vmem:[#allocation5 + $0xb0] sm:$0xff]
    %v132 = vld [vmem:[#allocation5 + $0xb8] sm:$0xff]
    %v133 = vld [vmem:[#allocation5 + $0xc0] sm:$0xff]
    %v134 = vld [vmem:[#allocation5 + $0xc8] sm:$0xff]
    %v135 = vld [vmem:[#allocation5 + $0xd0] sm:$0xff]
    %v136 = vld [vmem:[#allocation5 + $0xd8] sm:$0xff]
    %v137 = vld [vmem:[#allocation5 + $0xe0] sm:$0xff]
    %v138 = vld [vmem:[#allocation5 + $0xe8] sm:$0xff]
    %v139 = vld [vmem:[#allocation5 + $0xf0] sm:$0xff]
    %v140 = vld [vmem:[#allocation5 + $0xf8] sm:$0xff]
    %v141 = vld [vmem:[#allocation5 + $0x100] sm:$0xff]
    %v142 = vld [vmem:[#allocation5 + $0x108] sm:$0xff]
    %v143 = vld [vmem:[#allocation5 + $0x110] sm:$0xff]
    %v144 = vld [vmem:[#allocation5 + $0x118] sm:$0xff]
    %v145 = vld [vmem:[#allocation5 + $0x120] sm:$0xff]
    %v146 = vld [vmem:[#allocation5 + $0x128] sm:$0xff]
    %v147 = vld [vmem:[#allocation5 + $0x130] sm:$0xff]
    %v148 = vld [vmem:[#allocation5 + $0x138] sm:$0xff]
    %v149 = vld [vmem:[#allocation5 + $0x140] sm:$0xff]
    %v150 = vld [vmem:[#allocation5 + $0x148] sm:$0xff]
    %v151 = vld [vmem:[#allocation5 + $0x150] sm:$0xff]
    %v152 = vld [vmem:[#allocation5 + $0x158] sm:$0xff]
    %v153 = vld [vmem:[#allocation5 + $0x160] sm:$0xff]
    %v154 = vld [vmem:[#allocation5 + $0x168] sm:$0xff]
    %v155 = vld [vmem:[#allocation5 + $0x170] sm:$0xff]
    %v156 = vld [vmem:[#allocation5 + $0x178] sm:$0xff]
    %v157 = vld [vmem:[#allocation5 + $0x180] sm:$0xff]
    %v158 = vld [vmem:[#allocation5 + $0x188] sm:$0xff]
    %v159 = vld [vmem:[#allocation5 + $0x190] sm:$0xff]
    %v160 = vld [vmem:[#allocation5 + $0x198] sm:$0xff]
    %v161 = vld [vmem:[#allocation5 + $0x1a0] sm:$0xff]
    %v162 = vld [vmem:[#allocation5 + $0x1a8] sm:$0xff]
    %v163 = vld [vmem:[#allocation5 + $0x1b0] sm:$0xff]
    %v164 = vld [vmem:[#allocation5 + $0x1b8] sm:$0xff]
    %v165 = vld [vmem:[#allocation5 + $0x1c0] sm:$0xff]
    %v166 = vld [vmem:[#allocation5 + $0x1c8] sm:$0xff]
    %v167 = vld [vmem:[#allocation5 + $0x1d0] sm:$0xff]
    %v168 = vld [vmem:[#allocation5 + $0x1d8] sm:$0xff]
    %v169 = vld [vmem:[#allocation5 + $0x1e0] sm:$0xff]
    %v170 = vld [vmem:[#allocation5 + $0x1e8] sm:$0xff]
    %v171 = vld [vmem:[#allocation5 + $0x1f0] sm:$0xff]
    %v172 = vld [vmem:[#allocation5 + $0x1f8] sm:$0xff]
    %v173 = vld [vmem:[#allocation5 + $0x200] sm:$0xff]
    %v174 = vld [vmem:[#allocation5 + $0x208] sm:$0xff]
    %v175 = vld [vmem:[#allocation5 + $0x210] sm:$0xff]
    %v176 = vld [vmem:[#allocation5 + $0x218] sm:$0xff]
    %v177 = vld [vmem:[#allocation5 + $0x220] sm:$0xff]
    %v178 = vld [vmem:[#allocation5 + $0x228] sm:$0xff]
    %v179 = vld [vmem:[#allocation5 + $0x230] sm:$0xff]
    %v180 = vld [vmem:[#allocation5 + $0x238] sm:$0xff]
    %v181 = vld [vmem:[#allocation5 + $0x240] sm:$0xff]
    %v182 = vld [vmem:[#allocation5 + $0x248] sm:$0xff]
    %v183 = vld [vmem:[#allocation5 + $0x250] sm:$0xff]
    %v184 = vld [vmem:[#allocation5 + $0x258] sm:$0xff]
    %v185 = vld [vmem:[#allocation5 + $0x260] sm:$0xff]
    %v186 = vld [vmem:[#allocation5 + $0x268] sm:$0xff]
    %v187 = vld [vmem:[#allocation5 + $0x270] sm:$0xff]
    %v188 = vld [vmem:[#allocation5 + $0x278] sm:$0xff]
    %v189 = vld [vmem:[#allocation5 + $0x280] sm:$0xff]
    %v190 = vld [vmem:[#allocation5 + $0x288] sm:$0xff]
    %v191 = vld [vmem:[#allocation5 + $0x290] sm:$0xff]
    %v192 = vld [vmem:[#allocation5 + $0x298] sm:$0xff]
    %v193 = vld [vmem:[#allocation5 + $0x2a0] sm:$0xff]
    %v194 = vld [vmem:[#allocation5 + $0x2a8] sm:$0xff]
    %v195 = vld [vmem:[#allocation5 + $0x2b0] sm:$0xff]
    %v196 = vld [vmem:[#allocation5 + $0x2b8] sm:$0xff]
    %v197 = vld [vmem:[#allocation5 + $0x2c0] sm:$0xff]
    %v198 = vld [vmem:[#allocation5 + $0x2c8] sm:$0xff]
    %v199 = vld [vmem:[#allocation5 + $0x2d0] sm:$0xff]
    %v200 = vld [vmem:[#allocation5 + $0x2d8] sm:$0xff]
    %v201 = vld [vmem:[#allocation5 + $0x2e0] sm:$0xff]
    %v202 = vld [vmem:[#allocation5 + $0x2e8] sm:$0xff]
    %v203 = vld [vmem:[#allocation5 + $0x2f0] sm:$0xff]
    %v204 = vld [vmem:[#allocation5 + $0x2f8] sm:$0xff]
    %v205 = vld [vmem:[#allocation5 + $0x300] sm:$0xff]
    %v206 = vld [vmem:[#allocation5 + $0x308] sm:$0xff]
    %v207 = vld [vmem:[#allocation5 + $0x310] sm:$0xff]
    %v208 = vld [vmem:[#allocation5 + $0x318] sm:$0xff]
    %v209 = vld [vmem:[#allocation5 + $0x320] sm:$0xff]
    %v210 = vld [vmem:[#allocation5 + $0x328] sm:$0xff]
    %v211 = vld [vmem:[#allocation5 + $0x330] sm:$0xff]
    %v212 = vld [vmem:[#allocation5 + $0x338] sm:$0xff]
    %v213 = vld [vmem:[#allocation5 + $0x340] sm:$0xff]
    %v214 = vld [vmem:[#allocation5 + $0x348] sm:$0xff]
    %v215 = vld [vmem:[#allocation5 + $0x350] sm:$0xff]
    %v216 = vld [vmem:[#allocation5 + $0x358] sm:$0xff]
    %v217 = vld [vmem:[#allocation5 + $0x360] sm:$0xff]
    %v218 = vld [vmem:[#allocation5 + $0x368] sm:$0xff]
    %v219 = vld [vmem:[#allocation5 + $0x370] sm:$0xff]
    %v220 = vld [vmem:[#allocation5 + $0x378] sm:$0xff]
    %v221 = vld [vmem:[#allocation5 + $0x380] sm:$0xff]
    %v222 = vld [vmem:[#allocation5 + $0x388] sm:$0xff]
    %v223 = vld [vmem:[#allocation5 + $0x390] sm:$0xff]
    %v224 = vld [vmem:[#allocation5 + $0x398] sm:$0xff]
    %v225 = vld [vmem:[#allocation5 + $0x3a0] sm:$0xff]
    %v226 = vld [vmem:[#allocation5 + $0x3a8] sm:$0xff]
    %v227 = vld [vmem:[#allocation5 + $0x3b0] sm:$0xff]
    %v228 = vld [vmem:[#allocation5 + $0x3b8] sm:$0xff]
    %v229 = vld [vmem:[#allocation5 + $0x3c0] sm:$0xff]
    %v230 = vld [vmem:[#allocation5 + $0x3c8] sm:$0xff]
    %v231 = vld [vmem:[#allocation5 + $0x3d0] sm:$0xff]
    %v232 = vld [vmem:[#allocation5 + $0x3d8] sm:$0xff]
    %v233 = vld [vmem:[#allocation5 + $0x3e0] sm:$0xff]
    %v234 = vld [vmem:[#allocation5 + $0x3e8] sm:$0xff]
    %v235 = vld [vmem:[#allocation5 + $0x3f0] sm:$0xff]
    %v236 = vld [vmem:[#allocation5 + $0x3f8] sm:$0xff]
    %v237 = vld [vmem:[#allocation5 + $0x400] sm:$0xff]
    %v238 = vld [vmem:[#allocation5 + $0x408] sm:$0xff]
    %v239 = vld [vmem:[#allocation5 + $0x410] sm:$0xff]
    %v240 = vld [vmem:[#allocation5 + $0x418] sm:$0xff]
    %v241 = vld [vmem:[#allocation5 + $0x420] sm:$0xff]
    %v242 = vld [vmem:[#allocation5 + $0x428] sm:$0xff]
    %v243 = vld [vmem:[#allocation5 + $0x430] sm:$0xff]
    %v244 = vld [vmem:[#allocation5 + $0x438] sm:$0xff]
    %v245 = vld [vmem:[#allocation5 + $0x440] sm:$0xff]
    %v246 = vld [vmem:[#allocation5 + $0x448] sm:$0xff]
    %v247 = vld [vmem:[#allocation5 + $0x450] sm:$0xff]
    %v248 = vld [vmem:[#allocation5 + $0x458] sm:$0xff]
    %v249 = vld [vmem:[#allocation5 + $0x460] sm:$0xff]
    %v250 = vld [vmem:[#allocation5 + $0x468] sm:$0xff]
    %v251 = vld [vmem:[#allocation5 + $0x470] sm:$0xff]
    %v252 = vld [vmem:[#allocation5 + $0x478] sm:$0xff]
    %v253 = vld [vmem:[#allocation5 + $0x480] sm:$0xff]
    %v254 = vld [vmem:[#allocation5 + $0x488] sm:$0xff]
    %v255 = vld [vmem:[#allocation5 + $0x490] sm:$0xff]
    %v256 = vld [vmem:[#allocation5 + $0x498] sm:$0xff]
    %v257 = vld [vmem:[#allocation5 + $0x4a0] sm:$0xff]
    %v258 = vld [vmem:[#allocation5 + $0x4a8] sm:$0xff]
    %v259 = vld [vmem:[#allocation5 + $0x4b0] sm:$0xff]
    %v260 = vld [vmem:[#allocation5 + $0x4b8] sm:$0xff]
    %v261 = vld [vmem:[#allocation5 + $0x4c0] sm:$0xff]
    %v262 = vld [vmem:[#allocation5 + $0x4c8] sm:$0xff]
    %v263 = vld [vmem:[#allocation5 + $0x4d0] sm:$0xff]
    %v264 = vld [vmem:[#allocation5 + $0x4d8] sm:$0xff]
    %v265 = vld [vmem:[#allocation5 + $0x4e0] sm:$0xff]
    %v266 = vld [vmem:[#allocation5 + $0x4e8] sm:$0xff]
    %v267 = vld [vmem:[#allocation5 + $0x4f0] sm:$0xff]
    %v268 = vld [vmem:[#allocation5 + $0x4f8] sm:$0xff]
    %v269 = vld [vmem:[#allocation5 + $0x500] sm:$0xff]
    %v270 = vld [vmem:[#allocation5 + $0x508] sm:$0xff]
    %v271 = vld [vmem:[#allocation5 + $0x510] sm:$0xff]
    %v272 = vld [vmem:[#allocation5 + $0x518] sm:$0xff]
    %v273 = vld [vmem:[#allocation5 + $0x520] sm:$0xff]
    %v274 = vld [vmem:[#allocation5 + $0x528] sm:$0xff]
    %v275 = vld [vmem:[#allocation5 + $0x530] sm:$0xff]
    %v276 = vld [vmem:[#allocation5 + $0x538] sm:$0xff]
    %v277 = vld [vmem:[#allocation5 + $0x540] sm:$0xff]
    %v278 = vld [vmem:[#allocation5 + $0x548] sm:$0xff]
    %v279 = vld [vmem:[#allocation5 + $0x550] sm:$0xff]
    %v280 = vld [vmem:[#allocation5 + $0x558] sm:$0xff]
    %v281 = vld [vmem:[#allocation5 + $0x560] sm:$0xff]
    %v282 = vld [vmem:[#allocation5 + $0x568] sm:$0xff]
    %v283 = vld [vmem:[#allocation5 + $0x570] sm:$0xff]
    %v284 = vld [vmem:[#allocation5 + $0x578] sm:$0xff]
    %v285 = vld [vmem:[#allocation5 + $0x580] sm:$0xff]
    %v286 = vld [vmem:[#allocation5 + $0x588] sm:$0xff]
    %v287 = vld [vmem:[#allocation5 + $0x590] sm:$0xff]
    %v288 = vld [vmem:[#allocation5 + $0x598] sm:$0xff]
    %v289 = vld [vmem:[#allocation5 + $0x5a0] sm:$0xff]
    %v290 = vld [vmem:[#allocation5 + $0x5a8] sm:$0xff]
    %v291 = vld [vmem:[#allocation5 + $0x5b0] sm:$0xff]
    %v292 = vld [vmem:[#allocation5 + $0x5b8] sm:$0xff]
    %v293 = vld [vmem:[#allocation5 + $0x5c0] sm:$0xff]
    %v294 = vld [vmem:[#allocation5 + $0x5c8] sm:$0xff]
    %v295 = vld [vmem:[#allocation5 + $0x5d0] sm:$0xff]
    %v296 = vld [vmem:[#allocation5 + $0x5d8] sm:$0xff]
    %v297 = vld [vmem:[#allocation5 + $0x5e0] sm:$0xff]
    %v298 = vld [vmem:[#allocation5 + $0x5e8] sm:$0xff]
    %v299 = vld [vmem:[#allocation5 + $0x5f0] sm:$0xff]
    %v300 = vld [vmem:[#allocation5 + $0x5f8] sm:$0xff]
    %v301 = vld [vmem:[#allocation5 + $0x600] sm:$0xff]
    %v302 = vld [vmem:[#allocation5 + $0x608] sm:$0xff]
    %v303 = vld [vmem:[#allocation5 + $0x610] sm:$0xff]
    %v304 = vld [vmem:[#allocation5 + $0x618] sm:$0xff]
    %v305 = vld [vmem:[#allocation5 + $0x620] sm:$0xff]
    %v306 = vld [vmem:[#allocation5 + $0x628] sm:$0xff]
    %v307 = vld [vmem:[#allocation5 + $0x630] sm:$0xff]
    %v308 = vld [vmem:[#allocation5 + $0x638] sm:$0xff]
    %v309 = vld [vmem:[#allocation5 + $0x640] sm:$0xff]
    %v310 = vld [vmem:[#allocation5 + $0x648] sm:$0xff]
    %v311 = vld [vmem:[#allocation5 + $0x650] sm:$0xff]
    %v312 = vld [vmem:[#allocation5 + $0x658] sm:$0xff]
    %v313 = vld [vmem:[#allocation5 + $0x660] sm:$0xff]
    %v314 = vld [vmem:[#allocation5 + $0x668] sm:$0xff]
    %v315 = vld [vmem:[#allocation5 + $0x670] sm:$0xff]
    %v316 = vld [vmem:[#allocation5 + $0x678] sm:$0xff]
    %v317 = vld [vmem:[#allocation5 + $0x680] sm:$0xff]
    %v318 = vld [vmem:[#allocation5 + $0x688] sm:$0xff]
    %v319 = vld [vmem:[#allocation5 + $0x690] sm:$0xff]
    %v320 = vld [vmem:[#allocation5 + $0x698] sm:$0xff]
    %v321 = vld [vmem:[#allocation5 + $0x6a0] sm:$0xff]
    %v322 = vld [vmem:[#allocation5 + $0x6a8] sm:$0xff]
    %v323 = vld [vmem:[#allocation5 + $0x6b0] sm:$0xff]
    %v324 = vld [vmem:[#allocation5 + $0x6b8] sm:$0xff]
    %v325 = vld [vmem:[#allocation5 + $0x6c0] sm:$0xff]
    %v326 = vld [vmem:[#allocation5 + $0x6c8] sm:$0xff]
    %v327 = vld [vmem:[#allocation5 + $0x6d0] sm:$0xff]
    %v328 = vld [vmem:[#allocation5 + $0x6d8] sm:$0xff]
    %v329 = vld [vmem:[#allocation5 + $0x6e0] sm:$0xff]
    %v330 = vld [vmem:[#allocation5 + $0x6e8] sm:$0xff]
    %v331 = vld [vmem:[#allocation5 + $0x6f0] sm:$0xff]
    %v332 = vld [vmem:[#allocation5 + $0x6f8] sm:$0xff]
    %v333 = vld [vmem:[#allocation5 + $0x700] sm:$0xff]
    %v334 = vld [vmem:[#allocation5 + $0x708] sm:$0xff]
    %v335 = vld [vmem:[#allocation5 + $0x710] sm:$0xff]
    %v336 = vld [vmem:[#allocation5 + $0x718] sm:$0xff]
    %v337 = vld [vmem:[#allocation5 + $0x720] sm:$0xff]
    %v338 = vld [vmem:[#allocation5 + $0x728] sm:$0xff]
    %v339 = vld [vmem:[#allocation5 + $0x730] sm:$0xff]
    %v340 = vld [vmem:[#allocation5 + $0x738] sm:$0xff]
    %v341 = vld [vmem:[#allocation5 + $0x740] sm:$0xff]
    %v342 = vld [vmem:[#allocation5 + $0x748] sm:$0xff]
    %v343 = vld [vmem:[#allocation5 + $0x750] sm:$0xff]
    %v344 = vld [vmem:[#allocation5 + $0x758] sm:$0xff]
    %v345 = vld [vmem:[#allocation5 + $0x760] sm:$0xff]
    %v346 = vld [vmem:[#allocation5 + $0x768] sm:$0xff]
    %v347 = vld [vmem:[#allocation5 + $0x770] sm:$0xff]
    %v348 = vld [vmem:[#allocation5 + $0x778] sm:$0xff]
    %v349 = vld [vmem:[#allocation5 + $0x780] sm:$0xff]
    %v350 = vld [vmem:[#allocation5 + $0x788] sm:$0xff]
    %v351 = vld [vmem:[#allocation5 + $0x790] sm:$0xff]
    %v352 = vld [vmem:[#allocation5 + $0x798] sm:$0xff]
    %v353 = vld [vmem:[#allocation5 + $0x7a0] sm:$0xff]
    %v354 = vld [vmem:[#allocation5 + $0x7a8] sm:$0xff]
    %v355 = vld [vmem:[#allocation5 + $0x7b0] sm:$0xff]
    %v356 = vld [vmem:[#allocation5 + $0x7b8] sm:$0xff]
    %v357 = vld [vmem:[#allocation5 + $0x7c0] sm:$0xff]
    %v358 = vld [vmem:[#allocation5 + $0x7c8] sm:$0xff]
    %v359 = vld [vmem:[#allocation5 + $0x7d0] sm:$0xff]
    %v360 = vld [vmem:[#allocation5 + $0x7d8] sm:$0xff]
    %v361 = vld [vmem:[#allocation5 + $0x7e0] sm:$0xff]
    %v362 = vld [vmem:[#allocation5 + $0x7e8] sm:$0xff]
    %v363 = vld [vmem:[#allocation5 + $0x7f0] sm:$0xff]
    %v364 = vld [vmem:[#allocation5 + $0x7f8] sm:$0xff]
    %v365 = vld [vmem:[#allocation5 + $0x800] sm:$0xff]
    %v366 = vld [vmem:[#allocation5 + $0x808] sm:$0xff]
    %v367 = vld [vmem:[#allocation5 + $0x810] sm:$0xff]
    %v368 = vld [vmem:[#allocation5 + $0x818] sm:$0xff]
    %v369 = vld [vmem:[#allocation5 + $0x820] sm:$0xff]
    %v370 = vld [vmem:[#allocation5 + $0x828] sm:$0xff]
    %v371 = vld [vmem:[#allocation5 + $0x830] sm:$0xff]
    %v372 = vld [vmem:[#allocation5 + $0x838] sm:$0xff]
    %v373 = vld [vmem:[#allocation5 + $0x840] sm:$0xff]
    %v374 = vld [vmem:[#allocation5 + $0x848] sm:$0xff]
    %v375 = vld [vmem:[#allocation5 + $0x850] sm:$0xff]
    %v376 = vld [vmem:[#allocation5 + $0x858] sm:$0xff]
    %v377 = vld [vmem:[#allocation5 + $0x860] sm:$0xff]
    %v378 = vld [vmem:[#allocation5 + $0x868] sm:$0xff]
    %v379 = vld [vmem:[#allocation5 + $0x870] sm:$0xff]
    %v380 = vld [vmem:[#allocation5 + $0x878] sm:$0xff]
    %v381 = vld [vmem:[#allocation5 + $0x880] sm:$0xff]
    %v382 = vld [vmem:[#allocation5 + $0x888] sm:$0xff]
    %v383 = vld [vmem:[#allocation5 + $0x890] sm:$0xff]
    %v384 = vld [vmem:[#allocation5 + $0x898] sm:$0xff]
    %v385 = vld [vmem:[#allocation5 + $0x8a0] sm:$0xff]
    %v386 = vld [vmem:[#allocation5 + $0x8a8] sm:$0xff]
    %v387 = vld [vmem:[#allocation5 + $0x8b0] sm:$0xff]
    %v388 = vld [vmem:[#allocation5 + $0x8b8] sm:$0xff]
    %v389 = vld [vmem:[#allocation5 + $0x8c0] sm:$0xff]
    %v390 = vld [vmem:[#allocation5 + $0x8c8] sm:$0xff]
    %v391 = vld [vmem:[#allocation5 + $0x8d0] sm:$0xff]
    %v392 = vld [vmem:[#allocation5 + $0x8d8] sm:$0xff]
    %v393 = vld [vmem:[#allocation5 + $0x8e0] sm:$0xff]
    %v394 = vld [vmem:[#allocation5 + $0x8e8] sm:$0xff]
    %v395 = vld [vmem:[#allocation5 + $0x8f0] sm:$0xff]
    %v396 = vld [vmem:[#allocation5 + $0x8f8] sm:$0xff]
    %v397 = vld [vmem:[#allocation5 + $0x900] sm:$0xff]
    %v398 = vld [vmem:[#allocation5 + $0x908] sm:$0xff]
    %v399 = vld [vmem:[#allocation5 + $0x910] sm:$0xff]
    %v400 = vld [vmem:[#allocation5 + $0x918] sm:$0xff]
    %v401 = vld [vmem:[#allocation5 + $0x920] sm:$0xff]
    %v402 = vld [vmem:[#allocation5 + $0x928] sm:$0xff]
    %v403 = vld [vmem:[#allocation5 + $0x930] sm:$0xff]
    %v404 = vld [vmem:[#allocation5 + $0x938] sm:$0xff]
    %v405 = vld [vmem:[#allocation5 + $0x940] sm:$0xff]
    %v406 = vld [vmem:[#allocation5 + $0x948] sm:$0xff]
    %v407 = vld [vmem:[#allocation5 + $0x950] sm:$0xff]
    %v408 = vld [vmem:[#allocation5 + $0x958] sm:$0xff]
    %v409 = vld [vmem:[#allocation5 + $0x960] sm:$0xff]
    %v410 = vld [vmem:[#allocation5 + $0x968] sm:$0xff]
    %v411 = vld [vmem:[#allocation5 + $0x970] sm:$0xff]
    %v412 = vld [vmem:[#allocation5 + $0x978] sm:$0xff]
    %v413 = vld [vmem:[#allocation5 + $0x980] sm:$0xff]
    %v414 = vld [vmem:[#allocation5 + $0x988] sm:$0xff]
    %v415 = vld [vmem:[#allocation5 + $0x990] sm:$0xff]
    %v416 = vld [vmem:[#allocation5 + $0x998] sm:$0xff]
    %v417 = vld [vmem:[#allocation5 + $0x9a0] sm:$0xff]
    %v418 = vld [vmem:[#allocation5 + $0x9a8] sm:$0xff]
    %v419 = vld [vmem:[#allocation5 + $0x9b0] sm:$0xff]
    %v420 = vld [vmem:[#allocation5 + $0x9b8] sm:$0xff]
    %v421 = vld [vmem:[#allocation5 + $0x9c0] sm:$0xff]
    %v422 = vld [vmem:[#allocation5 + $0x9c8] sm:$0xff]
    %v423 = vld [vmem:[#allocation5 + $0x9d0] sm:$0xff]
    %v424 = vld [vmem:[#allocation5 + $0x9d8] sm:$0xff]
    %v425 = vld [vmem:[#allocation5 + $0x9e0] sm:$0xff]
    %v426 = vld [vmem:[#allocation5 + $0x9e8] sm:$0xff]
    %v427 = vld [vmem:[#allocation5 + $0x9f0] sm:$0xff]
    %v428 = vld [vmem:[#allocation5 + $0x9f8] sm:$0xff]
    %v429 = vld [vmem:[#allocation5 + $0xa00] sm:$0xff]
    %v430 = vld [vmem:[#allocation5 + $0xa08] sm:$0xff]
    %v431 = vld [vmem:[#allocation5 + $0xa10] sm:$0xff]
    %v432 = vld [vmem:[#allocation5 + $0xa18] sm:$0xff]
    %v433 = vld [vmem:[#allocation5 + $0xa20] sm:$0xff]
    %v434 = vld [vmem:[#allocation5 + $0xa28] sm:$0xff]
    %v435 = vld [vmem:[#allocation5 + $0xa30] sm:$0xff]
    %v436 = vld [vmem:[#allocation5 + $0xa38] sm:$0xff]
    %v437 = vld [vmem:[#allocation5 + $0xa40] sm:$0xff]
    %v438 = vld [vmem:[#allocation5 + $0xa48] sm:$0xff]
    %v439 = vld [vmem:[#allocation5 + $0xa50] sm:$0xff]
    %v440 = vld [vmem:[#allocation5 + $0xa58] sm:$0xff]
    %v441 = vld [vmem:[#allocation5 + $0xa60] sm:$0xff]
    %v442 = vld [vmem:[#allocation5 + $0xa68] sm:$0xff]
    %v443 = vld [vmem:[#allocation5 + $0xa70] sm:$0xff]
    %v444 = vld [vmem:[#allocation5 + $0xa78] sm:$0xff]
    %v445 = vld [vmem:[#allocation5 + $0xa80] sm:$0xff]
    %v446 = vld [vmem:[#allocation5 + $0xa88] sm:$0xff]
    %v447 = vld [vmem:[#allocation5 + $0xa90] sm:$0xff]
    %v448 = vld [vmem:[#allocation5 + $0xa98] sm:$0xff]
    %v449 = vld [vmem:[#allocation5 + $0xaa0] sm:$0xff]
    %v450 = vld [vmem:[#allocation5 + $0xaa8] sm:$0xff]
    %v451 = vld [vmem:[#allocation5 + $0xab0] sm:$0xff]
    %v452 = vld [vmem:[#allocation5 + $0xab8] sm:$0xff]
    %v453 = vld [vmem:[#allocation5 + $0xac0] sm:$0xff]
    %v454 = vld [vmem:[#allocation5 + $0xac8] sm:$0xff]
    %v455 = vld [vmem:[#allocation5 + $0xad0] sm:$0xff]
    %v456 = vld [vmem:[#allocation5 + $0xad8] sm:$0xff]
    %v457 = vld [vmem:[#allocation5 + $0xae0] sm:$0xff]
    %v458 = vld [vmem:[#allocation5 + $0xae8] sm:$0xff]
    %v459 = vld [vmem:[#allocation5 + $0xaf0] sm:$0xff]
    %v460 = vld [vmem:[#allocation5 + $0xaf8] sm:$0xff]
    %v461 = vld [vmem:[#allocation5 + $0xb00] sm:$0xff]
    %v462 = vld [vmem:[#allocation5 + $0xb08] sm:$0xff]
    %v463 = vld [vmem:[#allocation5 + $0xb10] sm:$0xff]
    %v464 = vld [vmem:[#allocation5 + $0xb18] sm:$0xff]
    %v465 = vld [vmem:[#allocation5 + $0xb20] sm:$0xff]
    %v466 = vld [vmem:[#allocation5 + $0xb28] sm:$0xff]
    %v467 = vld [vmem:[#allocation5 + $0xb30] sm:$0xff]
    %v468 = vld [vmem:[#allocation5 + $0xb38] sm:$0xff]
    %v469 = vld [vmem:[#allocation5 + $0xb40] sm:$0xff]
    %v470 = vld [vmem:[#allocation5 + $0xb48] sm:$0xff]
    %v471 = vld [vmem:[#allocation5 + $0xb50] sm:$0xff]
    %v472 = vld [vmem:[#allocation5 + $0xb58] sm:$0xff]
    %v473 = vld [vmem:[#allocation5 + $0xb60] sm:$0xff]
    %v474 = vld [vmem:[#allocation5 + $0xb68] sm:$0xff]
    %v475 = vld [vmem:[#allocation5 + $0xb70] sm:$0xff]
    %v476 = vld [vmem:[#allocation5 + $0xb78] sm:$0xff]
    %v477 = vld [vmem:[#allocation5 + $0xb80] sm:$0xff]
    %v478 = vld [vmem:[#allocation5 + $0xb88] sm:$0xff]
    %v479 = vld [vmem:[#allocation5 + $0xb90] sm:$0xff]
    %v480 = vld [vmem:[#allocation5 + $0xb98] sm:$0xff]
    %v481 = vld [vmem:[#allocation5 + $0xba0] sm:$0xff]
    %v482 = vld [vmem:[#allocation5 + $0xba8] sm:$0xff]
    %v483 = vld [vmem:[#allocation5 + $0xbb0] sm:$0xff]
    %v484 = vld [vmem:[#allocation5 + $0xbb8] sm:$0xff]
    %v485 = vld [vmem:[#allocation5 + $0xbc0] sm:$0xff]
    %v486 = vld [vmem:[#allocation5 + $0xbc8] sm:$0xff]
    %v487 = vld [vmem:[#allocation5 + $0xbd0] sm:$0xff]
    %v488 = vld [vmem:[#allocation5 + $0xbd8] sm:$0xff]
    %v489 = vld [vmem:[#allocation5 + $0xbe0] sm:$0xff]
    %v490 = vld [vmem:[#allocation5 + $0xbe8] sm:$0xff]
    %v491 = vld [vmem:[#allocation5 + $0xbf0] sm:$0xff]
    %v492 = vld [vmem:[#allocation5 + $0xbf8] sm:$0xff]
    %v493 = vld [vmem:[#allocation5 + $0xc00] sm:$0xff]
    %v494 = vld [vmem:[#allocation5 + $0xc08] sm:$0xff]
    %v495 = vld [vmem:[#allocation5 + $0xc10] sm:$0xff]
    %v496 = vld [vmem:[#allocation5 + $0xc18] sm:$0xff]
    %v497 = vld [vmem:[#allocation5 + $0xc20] sm:$0xff]
    %v498 = vld [vmem:[#allocation5 + $0xc28] sm:$0xff]
    %v499 = vld [vmem:[#allocation5 + $0xc30] sm:$0xff]
    %v500 = vld [vmem:[#allocation5 + $0xc38] sm:$0xff]
    %v501 = vld [vmem:[#allocation5 + $0xc40] sm:$0xff]
    %v502 = vld [vmem:[#allocation5 + $0xc48] sm:$0xff]
    %v503 = vld [vmem:[#allocation5 + $0xc50] sm:$0xff]
    %v504 = vld [vmem:[#allocation5 + $0xc58] sm:$0xff]
    %v505 = vld [vmem:[#allocation5 + $0xc60] sm:$0xff]
    %v506 = vld [vmem:[#allocation5 + $0xc68] sm:$0xff]
    %v507 = vld [vmem:[#allocation5 + $0xc70] sm:$0xff]
    %v508 = vld [vmem:[#allocation5 + $0xc78] sm:$0xff]
    %v509 = vld [vmem:[#allocation5 + $0xc80] sm:$0xff]
    %v510 = vld [vmem:[#allocation5 + $0xc88] sm:$0xff]
    %v511 = vld [vmem:[#allocation5 + $0xc90] sm:$0xff]
    %v512 = vld [vmem:[#allocation5 + $0xc98] sm:$0xff]
    %v513 = vld [vmem:[#allocation5 + $0xca0] sm:$0xff]
    %v514 = vld [vmem:[#allocation5 + $0xca8] sm:$0xff]
    %v515 = vld [vmem:[#allocation5 + $0xcb0] sm:$0xff]
    %v516 = vld [vmem:[#allocation5 + $0xcb8] sm:$0xff]
    %v517 = vld [vmem:[#allocation5 + $0xcc0] sm:$0xff]
    %v518 = vld [vmem:[#allocation5 + $0xcc8] sm:$0xff]
    %v519 = vld [vmem:[#allocation5 + $0xcd0] sm:$0xff]
    %v520 = vld [vmem:[#allocation5 + $0xcd8] sm:$0xff]
    %v521 = vld [vmem:[#allocation5 + $0xce0] sm:$0xff]
    %v522 = vld [vmem:[#allocation5 + $0xce8] sm:$0xff]
    %v523 = vld [vmem:[#allocation5 + $0xcf0] sm:$0xff]
    %v524 = vld [vmem:[#allocation5 + $0xcf8] sm:$0xff]
    %v525 = vld [vmem:[#allocation5 + $0xd00] sm:$0xff]
    %v526 = vld [vmem:[#allocation5 + $0xd08] sm:$0xff]
    %v527 = vld [vmem:[#allocation5 + $0xd10] sm:$0xff]
    %v528 = vld [vmem:[#allocation5 + $0xd18] sm:$0xff]
    %v529 = vld [vmem:[#allocation5 + $0xd20] sm:$0xff]
    %v530 = vld [vmem:[#allocation5 + $0xd28] sm:$0xff]
    %v531 = vld [vmem:[#allocation5 + $0xd30] sm:$0xff]
    %v532 = vld [vmem:[#allocation5 + $0xd38] sm:$0xff]
    %v533 = vld [vmem:[#allocation5 + $0xd40] sm:$0xff]
    %v534 = vld [vmem:[#allocation5 + $0xd48] sm:$0xff]
    %v535 = vld [vmem:[#allocation5 + $0xd50] sm:$0xff]
    %v536 = vld [vmem:[#allocation5 + $0xd58] sm:$0xff]
    %v537 = vld [vmem:[#allocation5 + $0xd60] sm:$0xff]
    %v538 = vld [vmem:[#allocation5 + $0xd68] sm:$0xff]
    %v539 = vld [vmem:[#allocation5 + $0xd70] sm:$0xff]
    %v540 = vld [vmem:[#allocation5 + $0xd78] sm:$0xff]
    %v541 = vld [vmem:[#allocation5 + $0xd80] sm:$0xff]
    %v542 = vld [vmem:[#allocation5 + $0xd88] sm:$0xff]
    %v543 = vld [vmem:[#allocation5 + $0xd90] sm:$0xff]
    %v544 = vld [vmem:[#allocation5 + $0xd98] sm:$0xff]
    %v545 = vld [vmem:[#allocation5 + $0xda0] sm:$0xff]
    %v546 = vld [vmem:[#allocation5 + $0xda8] sm:$0xff]
    %v547 = vld [vmem:[#allocation5 + $0xdb0] sm:$0xff]
    %v548 = vld [vmem:[#allocation5 + $0xdb8] sm:$0xff]
    %v549 = vld [vmem:[#allocation5 + $0xdc0] sm:$0xff]
    %v550 = vld [vmem:[#allocation5 + $0xdc8] sm:$0xff]
    %v551 = vld [vmem:[#allocation5 + $0xdd0] sm:$0xff]
    %v552 = vld [vmem:[#allocation5 + $0xdd8] sm:$0xff]
    %v553 = vld [vmem:[#allocation5 + $0xde0] sm:$0xff]
    %v554 = vld [vmem:[#allocation5 + $0xde8] sm:$0xff]
    %v555 = vld [vmem:[#allocation5 + $0xdf0] sm:$0xff]
    %v556 = vld [vmem:[#allocation5 + $0xdf8] sm:$0xff]
    %v557 = vld [vmem:[#allocation5 + $0xe00] sm:$0xff]
    %v558 = vld [vmem:[#allocation5 + $0xe08] sm:$0xff]
    %v559 = vld [vmem:[#allocation5 + $0xe10] sm:$0xff]
    %v560 = vld [vmem:[#allocation5 + $0xe18] sm:$0xff]
    %v561 = vld [vmem:[#allocation5 + $0xe20] sm:$0xff]
    %v562 = vld [vmem:[#allocation5 + $0xe28] sm:$0xff]
    %v563 = vld [vmem:[#allocation5 + $0xe30] sm:$0xff]
    %v564 = vld [vmem:[#allocation5 + $0xe38] sm:$0xff]
    %v565 = vld [vmem:[#allocation5 + $0xe40] sm:$0xff]
    %v566 = vld [vmem:[#allocation5 + $0xe48] sm:$0xff]
    %v567 = vld [vmem:[#allocation5 + $0xe50] sm:$0xff]
    %v568 = vld [vmem:[#allocation5 + $0xe58] sm:$0xff]
    %v569 = vld [vmem:[#allocation5 + $0xe60] sm:$0xff]
    %v570 = vld [vmem:[#allocation5 + $0xe68] sm:$0xff]
    %v571 = vld [vmem:[#allocation5 + $0xe70] sm:$0xff]
    %v572 = vld [vmem:[#allocation5 + $0xe78] sm:$0xff]
    %v573 = vld [vmem:[#allocation5 + $0xe80] sm:$0xff]
    %v574 = vld [vmem:[#allocation5 + $0xe88] sm:$0xff]
    %v575 = vld [vmem:[#allocation5 + $0xe90] sm:$0xff]
    %v576 = vld [vmem:[#allocation5 + $0xe98] sm:$0xff]
    %v577 = vld [vmem:[#allocation5 + $0xea0] sm:$0xff]
    %v578 = vld [vmem:[#allocation5 + $0xea8] sm:$0xff]
    %v579 = vld [vmem:[#allocation5 + $0xeb0] sm:$0xff]
    %v580 = vld [vmem:[#allocation5 + $0xeb8] sm:$0xff]
    %v581 = vld [vmem:[#allocation5 + $0xec0] sm:$0xff]
    %v582 = vld [vmem:[#allocation5 + $0xec8] sm:$0xff]
    %v583 = vld [vmem:[#allocation5 + $0xed0] sm:$0xff]
    %v584 = vld [vmem:[#allocation5 + $0xed8] sm:$0xff]
    %v585 = vld [vmem:[#allocation5 + $0xee0] sm:$0xff]
    %v586 = vld [vmem:[#allocation5 + $0xee8] sm:$0xff]
    %v587 = vld [vmem:[#allocation5 + $0xef0] sm:$0xff]
    %v588 = vld [vmem:[#allocation5 + $0xef8] sm:$0xff]
    %v589 = vld [vmem:[#allocation5 + $0xf00] sm:$0xff]
    %v590 = vld [vmem:[#allocation5 + $0xf08] sm:$0xff]
    %v591 = vld [vmem:[#allocation5 + $0xf10] sm:$0xff]
    %v592 = vld [vmem:[#allocation5 + $0xf18] sm:$0xff]
    %v593 = vld [vmem:[#allocation5 + $0xf20] sm:$0xff]
    %v594 = vld [vmem:[#allocation5 + $0xf28] sm:$0xff]
    %v595 = vld [vmem:[#allocation5 + $0xf30] sm:$0xff]
    %v596 = vld [vmem:[#allocation5 + $0xf38] sm:$0xff]
    %v597 = vld [vmem:[#allocation5 + $0xf40] sm:$0xff]
    %v598 = vld [vmem:[#allocation5 + $0xf48] sm:$0xff]
    %v599 = vld [vmem:[#allocation5 + $0xf50] sm:$0xff]
    %v600 = vld [vmem:[#allocation5 + $0xf58] sm:$0xff]
    %v601 = vld [vmem:[#allocation5 + $0xf60] sm:$0xff]
    %v602 = vld [vmem:[#allocation5 + $0xf68] sm:$0xff]
    %v603 = vld [vmem:[#allocation5 + $0xf70] sm:$0xff]
    %v604 = vld [vmem:[#allocation5 + $0xf78] sm:$0xff]
    %v605 = vld [vmem:[#allocation5 + $0xf80] sm:$0xff]
    %v606 = vld [vmem:[#allocation5 + $0xf88] sm:$0xff]
    %v607 = vld [vmem:[#allocation5 + $0xf90] sm:$0xff]
    %v608 = vld [vmem:[#allocation5 + $0xf98] sm:$0xff]
    %v609 = vld [vmem:[#allocation5 + $0xfa0] sm:$0xff]
    %v610 = vld [vmem:[#allocation5 + $0xfa8] sm:$0xff]
    %v611 = vld [vmem:[#allocation5 + $0xfb0] sm:$0xff]
    %v612 = vld [vmem:[#allocation5 + $0xfb8] sm:$0xff]
    %v613 = vld [vmem:[#allocation5 + $0xfc0] sm:$0xff]
    %v614 = vld [vmem:[#allocation5 + $0xfc8] sm:$0xff]
    %v615 = vld [vmem:[#allocation5 + $0xfd0] sm:$0xff]
    %v616 = vld [vmem:[#allocation5 + $0xfd8] sm:$0xff]
    %v617 = vld [vmem:[#allocation5 + $0xfe0] sm:$0xff]
    %v618 = vld [vmem:[#allocation5 + $0xfe8] sm:$0xff]
    %v619 = vld [vmem:[#allocation5 + $0xff0] sm:$0xff]
    %v620 = vld [vmem:[#allocation5 + $0xff8] sm:$0xff]
    %v621 = vld [vmem:[#allocation7] sm:$0x3]
    %v623 = vperm.slane %v621, 0
    %v624 = vperm.slane %v621, 1
    %627 = vmatpush.msra.mxu0 %v139
    %628 = vmatpush.msra.mxu0 %v137
    %629 = vmatpush.msra.mxu0 %v135
    %630 = vmatpush.msra.mxu0 %v133
    %631 = vmatpush.msra.mxu0 %v131
    %632 = vmatpush.msra.mxu0 %v129
    %633 = vmatpush.msra.mxu0 %v127
    %634 = vmatpush.msra.mxu0 %v125
    %635 = vmatpush.msra.mxu0 %v123
    %636 = vmatpush.msra.mxu0 %v121
    %637 = vmatpush.msra.mxu0 %v119
    %638 = vmatpush.msra.mxu0 %v117
    %639 = vmatpush.msra.mxu0 %v115
    %640 = vmatpush.msra.mxu0 %v113
    %641 = vmatpush.msra.mxu0 %v111
    %642 = vmatpush.msra.mxu0 %v109
    %643 = vmatmul.f32.gmra.mxu0 %v93
    %v644 = vpop.f32.mrf.mxu0
    %v645 = vadd.f32 %v623, %v644
    %646 = vdwg.mxu0
    %647 = vmatpush.msra.mxu0 %v171
    %648 = vmatpush.msra.mxu0 %v169
    %649 = vmatpush.msra.mxu0 %v167
    %650 = vmatpush.msra.mxu0 %v165
    %651 = vmatpush.msra.mxu0 %v163
    %652 = vmatpush.msra.mxu0 %v161
    %653 = vmatpush.msra.mxu0 %v159
    %654 = vmatpush.msra.mxu0 %v157
    %655 = vmatpush.msra.mxu0 %v155
    %656 = vmatpush.msra.mxu0 %v153
    %657 = vmatpush.msra.mxu0 %v151
    %658 = vmatpush.msra.mxu0 %v149
    %659 = vmatpush.msra.mxu0 %v147
    %660 = vmatpush.msra.mxu0 %v145
    %661 = vmatpush.msra.mxu0 %v143
    %662 = vmatpush.msra.mxu0 %v141
    %663 = vmatmul.f32.gmra.mxu0 %v94
    %v664 = vpop.f32.mrf.mxu0
    %v665 = vadd.f32 %v645, %v664
    %666 = vdwg.mxu0
    %667 = vmatpush.msra.mxu0 %v203
    %668 = vmatpush.msra.mxu0 %v201
    %669 = vmatpush.msra.mxu0 %v199
    %670 = vmatpush.msra.mxu0 %v197
    %671 = vmatpush.msra.mxu0 %v195
    %672 = vmatpush.msra.mxu0 %v193
    %673 = vmatpush.msra.mxu0 %v191
    %674 = vmatpush.msra.mxu0 %v189
    %675 = vmatpush.msra.mxu0 %v187
    %676 = vmatpush.msra.mxu0 %v185
    %677 = vmatpush.msra.mxu0 %v183
    %678 = vmatpush.msra.mxu0 %v181
    %679 = vmatpush.msra.mxu0 %v179
    %680 = vmatpush.msra.mxu0 %v177
    %681 = vmatpush.msra.mxu0 %v175
    %682 = vmatpush.msra.mxu0 %v173
    %683 = vmatmul.f32.gmra.mxu0 %v95
    %v684 = vpop.f32.mrf.mxu0
    %v685 = vadd.f32 %v665, %v684
    %686 = vdwg.mxu0
    %687 = vmatpush.msra.mxu0 %v235
    %688 = vmatpush.msra.mxu0 %v233
    %689 = vmatpush.msra.mxu0 %v231
    %690 = vmatpush.msra.mxu0 %v229
    %691 = vmatpush.msra.mxu0 %v227
    %692 = vmatpush.msra.mxu0 %v225
    %693 = vmatpush.msra.mxu0 %v223
    %694 = vmatpush.msra.mxu0 %v221
    %695 = vmatpush.msra.mxu0 %v219
    %696 = vmatpush.msra.mxu0 %v217
    %697 = vmatpush.msra.mxu0 %v215
    %698 = vmatpush.msra.mxu0 %v213
    %699 = vmatpush.msra.mxu0 %v211
    %700 = vmatpush.msra.mxu0 %v209
    %701 = vmatpush.msra.mxu0 %v207
    %702 = vmatpush.msra.mxu0 %v205
    %703 = vmatmul.f32.gmra.mxu0 %v96
    %v704 = vpop.f32.mrf.mxu0
    %v705 = vadd.f32 %v685, %v704
    %706 = vdwg.mxu0
    %707 = vmatpush.msra.mxu0 %v267
    %708 = vmatpush.msra.mxu0 %v265
    %709 = vmatpush.msra.mxu0 %v263
    %710 = vmatpush.msra.mxu0 %v261
    %711 = vmatpush.msra.mxu0 %v259
    %712 = vmatpush.msra.mxu0 %v257
    %713 = vmatpush.msra.mxu0 %v255
    %714 = vmatpush.msra.mxu0 %v253
    %715 = vmatpush.msra.mxu0 %v251
    %716 = vmatpush.msra.mxu0 %v249
    %717 = vmatpush.msra.mxu0 %v247
    %718 = vmatpush.msra.mxu0 %v245
    %719 = vmatpush.msra.mxu0 %v243
    %720 = vmatpush.msra.mxu0 %v241
    %721 = vmatpush.msra.mxu0 %v239
    %722 = vmatpush.msra.mxu0 %v237
    %723 = vmatmul.f32.gmra.mxu0 %v97
    %v724 = vpop.f32.mrf.mxu0
    %v725 = vadd.f32 %v705, %v724
    %726 = vdwg.mxu0
    %727 = vmatpush.msra.mxu0 %v299
    %728 = vmatpush.msra.mxu0 %v297
    %729 = vmatpush.msra.mxu0 %v295
    %730 = vmatpush.msra.mxu0 %v293
    %731 = vmatpush.msra.mxu0 %v291
    %732 = vmatpush.msra.mxu0 %v289
    %733 = vmatpush.msra.mxu0 %v287
    %734 = vmatpush.msra.mxu0 %v285
    %735 = vmatpush.msra.mxu0 %v283
    %736 = vmatpush.msra.mxu0 %v281
    %737 = vmatpush.msra.mxu0 %v279
    %738 = vmatpush.msra.mxu0 %v277
    %739 = vmatpush.msra.mxu0 %v275
    %740 = vmatpush.msra.mxu0 %v273
    %741 = vmatpush.msra.mxu0 %v271
    %742 = vmatpush.msra.mxu0 %v269
    %743 = vmatmul.f32.gmra.mxu0 %v98
    %v744 = vpop.f32.mrf.mxu0
    %v745 = vadd.f32 %v725, %v744
    %746 = vdwg.mxu0
    %747 = vmatpush.msra.mxu0 %v331
    %748 = vmatpush.msra.mxu0 %v329
    %749 = vmatpush.msra.mxu0 %v327
    %750 = vmatpush.msra.mxu0 %v325
    %751 = vmatpush.msra.mxu0 %v323
    %752 = vmatpush.msra.mxu0 %v321
    %753 = vmatpush.msra.mxu0 %v319
    %754 = vmatpush.msra.mxu0 %v317
    %755 = vmatpush.msra.mxu0 %v315
    %756 = vmatpush.msra.mxu0 %v313
    %757 = vmatpush.msra.mxu0 %v311
    %758 = vmatpush.msra.mxu0 %v309
    %759 = vmatpush.msra.mxu0 %v307
    %760 = vmatpush.msra.mxu0 %v305
    %761 = vmatpush.msra.mxu0 %v303
    %762 = vmatpush.msra.mxu0 %v301
    %763 = vmatmul.f32.gmra.mxu0 %v99
    %v764 = vpop.f32.mrf.mxu0
    %v765 = vadd.f32 %v745, %v764
    %766 = vdwg.mxu0
    %767 = vmatpush.msra.mxu0 %v363
    %768 = vmatpush.msra.mxu0 %v361
    %769 = vmatpush.msra.mxu0 %v359
    %770 = vmatpush.msra.mxu0 %v357
    %771 = vmatpush.msra.mxu0 %v355
    %772 = vmatpush.msra.mxu0 %v353
    %773 = vmatpush.msra.mxu0 %v351
    %774 = vmatpush.msra.mxu0 %v349
    %775 = vmatpush.msra.mxu0 %v347
    %776 = vmatpush.msra.mxu0 %v345
    %777 = vmatpush.msra.mxu0 %v343
    %778 = vmatpush.msra.mxu0 %v341
    %779 = vmatpush.msra.mxu0 %v339
    %780 = vmatpush.msra.mxu0 %v337
    %781 = vmatpush.msra.mxu0 %v335
    %782 = vmatpush.msra.mxu0 %v333
    %783 = vmatmul.f32.gmra.mxu0 %v100
    %v784 = vpop.f32.mrf.mxu0
    %v785 = vadd.f32 %v765, %v784
    %786 = vdwg.mxu0
    %787 = vmatpush.msra.mxu0 %v395
    %788 = vmatpush.msra.mxu0 %v393
    %789 = vmatpush.msra.mxu0 %v391
    %790 = vmatpush.msra.mxu0 %v389
    %791 = vmatpush.msra.mxu0 %v387
    %792 = vmatpush.msra.mxu0 %v385
    %793 = vmatpush.msra.mxu0 %v383
    %794 = vmatpush.msra.mxu0 %v381
    %795 = vmatpush.msra.mxu0 %v379
    %796 = vmatpush.msra.mxu0 %v377
    %797 = vmatpush.msra.mxu0 %v375
    %798 = vmatpush.msra.mxu0 %v373
    %799 = vmatpush.msra.mxu0 %v371
    %800 = vmatpush.msra.mxu0 %v369
    %801 = vmatpush.msra.mxu0 %v367
    %802 = vmatpush.msra.mxu0 %v365
    %803 = vmatmul.f32.gmra.mxu0 %v101
    %v804 = vpop.f32.mrf.mxu0
    %v805 = vadd.f32 %v785, %v804
    %806 = vdwg.mxu0
    %807 = vmatpush.msra.mxu0 %v427
    %808 = vmatpush.msra.mxu0 %v425
    %809 = vmatpush.msra.mxu0 %v423
    %810 = vmatpush.msra.mxu0 %v421
    %811 = vmatpush.msra.mxu0 %v419
    %812 = vmatpush.msra.mxu0 %v417
    %813 = vmatpush.msra.mxu0 %v415
    %814 = vmatpush.msra.mxu0 %v413
    %815 = vmatpush.msra.mxu0 %v411
    %816 = vmatpush.msra.mxu0 %v409
    %817 = vmatpush.msra.mxu0 %v407
    %818 = vmatpush.msra.mxu0 %v405
    %819 = vmatpush.msra.mxu0 %v403
    %820 = vmatpush.msra.mxu0 %v401
    %821 = vmatpush.msra.mxu0 %v399
    %822 = vmatpush.msra.mxu0 %v397
    %823 = vmatmul.f32.gmra.mxu0 %v102
    %v824 = vpop.f32.mrf.mxu0
    %v825 = vadd.f32 %v805, %v824
    %826 = vdwg.mxu0
    %827 = vmatpush.msra.mxu0 %v459
    %828 = vmatpush.msra.mxu0 %v457
    %829 = vmatpush.msra.mxu0 %v455
    %830 = vmatpush.msra.mxu0 %v453
    %831 = vmatpush.msra.mxu0 %v451
    %832 = vmatpush.msra.mxu0 %v449
    %833 = vmatpush.msra.mxu0 %v447
    %834 = vmatpush.msra.mxu0 %v445
    %835 = vmatpush.msra.mxu0 %v443
    %836 = vmatpush.msra.mxu0 %v441
    %837 = vmatpush.msra.mxu0 %v439
    %838 = vmatpush.msra.mxu0 %v437
    %839 = vmatpush.msra.mxu0 %v435
    %840 = vmatpush.msra.mxu0 %v433
    %841 = vmatpush.msra.mxu0 %v431
    %842 = vmatpush.msra.mxu0 %v429
    %843 = vmatmul.f32.gmra.mxu0 %v103
    %v844 = vpop.f32.mrf.mxu0
    %v845 = vadd.f32 %v825, %v844
    %846 = vdwg.mxu0
    %847 = vmatpush.msra.mxu0 %v491
    %848 = vmatpush.msra.mxu0 %v489
    %849 = vmatpush.msra.mxu0 %v487
    %850 = vmatpush.msra.mxu0 %v485
    %851 = vmatpush.msra.mxu0 %v483
    %852 = vmatpush.msra.mxu0 %v481
    %853 = vmatpush.msra.mxu0 %v479
    %854 = vmatpush.msra.mxu0 %v477
    %855 = vmatpush.msra.mxu0 %v475
    %856 = vmatpush.msra.mxu0 %v473
    %857 = vmatpush.msra.mxu0 %v471
    %858 = vmatpush.msra.mxu0 %v469
    %859 = vmatpush.msra.mxu0 %v467
    %860 = vmatpush.msra.mxu0 %v465
    %861 = vmatpush.msra.mxu0 %v463
    %862 = vmatpush.msra.mxu0 %v461
    %863 = vmatmul.f32.gmra.mxu0 %v104
    %v864 = vpop.f32.mrf.mxu0
    %v865 = vadd.f32 %v845, %v864
    %866 = vdwg.mxu0
    %867 = vmatpush.msra.mxu0 %v523
    %868 = vmatpush.msra.mxu0 %v521
    %869 = vmatpush.msra.mxu0 %v519
    %870 = vmatpush.msra.mxu0 %v517
    %871 = vmatpush.msra.mxu0 %v515
    %872 = vmatpush.msra.mxu0 %v513
    %873 = vmatpush.msra.mxu0 %v511
    %874 = vmatpush.msra.mxu0 %v509
    %875 = vmatpush.msra.mxu0 %v507
    %876 = vmatpush.msra.mxu0 %v505
    %877 = vmatpush.msra.mxu0 %v503
    %878 = vmatpush.msra.mxu0 %v501
    %879 = vmatpush.msra.mxu0 %v499
    %880 = vmatpush.msra.mxu0 %v497
    %881 = vmatpush.msra.mxu0 %v495
    %882 = vmatpush.msra.mxu0 %v493
    %883 = vmatmul.f32.gmra.mxu0 %v105
    %v884 = vpop.f32.mrf.mxu0
    %v885 = vadd.f32 %v865, %v884
    %886 = vdwg.mxu0
    %887 = vmatpush.msra.mxu0 %v555
    %888 = vmatpush.msra.mxu0 %v553
    %889 = vmatpush.msra.mxu0 %v551
    %890 = vmatpush.msra.mxu0 %v549
    %891 = vmatpush.msra.mxu0 %v547
    %892 = vmatpush.msra.mxu0 %v545
    %893 = vmatpush.msra.mxu0 %v543
    %894 = vmatpush.msra.mxu0 %v541
    %895 = vmatpush.msra.mxu0 %v539
    %896 = vmatpush.msra.mxu0 %v537
    %897 = vmatpush.msra.mxu0 %v535
    %898 = vmatpush.msra.mxu0 %v533
    %899 = vmatpush.msra.mxu0 %v531
    %900 = vmatpush.msra.mxu0 %v529
    %901 = vmatpush.msra.mxu0 %v527
    %902 = vmatpush.msra.mxu0 %v525
    %903 = vmatmul.f32.gmra.mxu0 %v106
    %v904 = vpop.f32.mrf.mxu0
    %v905 = vadd.f32 %v885, %v904
    %906 = vdwg.mxu0
    %907 = vmatpush.msra.mxu0 %v587
    %908 = vmatpush.msra.mxu0 %v585
    %909 = vmatpush.msra.mxu0 %v583
    %910 = vmatpush.msra.mxu0 %v581
    %911 = vmatpush.msra.mxu0 %v579
    %912 = vmatpush.msra.mxu0 %v577
    %913 = vmatpush.msra.mxu0 %v575
    %914 = vmatpush.msra.mxu0 %v573
    %915 = vmatpush.msra.mxu0 %v571
    %916 = vmatpush.msra.mxu0 %v569
    %917 = vmatpush.msra.mxu0 %v567
    %918 = vmatpush.msra.mxu0 %v565
    %919 = vmatpush.msra.mxu0 %v563
    %920 = vmatpush.msra.mxu0 %v561
    %921 = vmatpush.msra.mxu0 %v559
    %922 = vmatpush.msra.mxu0 %v557
    %923 = vmatmul.f32.gmra.mxu0 %v107
    %v924 = vpop.f32.mrf.mxu0
    %v925 = vadd.f32 %v905, %v924
    %926 = vdwg.mxu0
    %927 = vmatpush.msra.mxu0 %v619
    %928 = vmatpush.msra.mxu0 %v617
    %929 = vmatpush.msra.mxu0 %v615
    %930 = vmatpush.msra.mxu0 %v613
    %931 = vmatpush.msra.mxu0 %v611
    %932 = vmatpush.msra.mxu0 %v609
    %933 = vmatpush.msra.mxu0 %v607
    %934 = vmatpush.msra.mxu0 %v605
    %935 = vmatpush.msra.mxu0 %v603
    %936 = vmatpush.msra.mxu0 %v601
    %937 = vmatpush.msra.mxu0 %v599
    %938 = vmatpush.msra.mxu0 %v597
    %939 = vmatpush.msra.mxu0 %v595
    %940 = vmatpush.msra.mxu0 %v593
    %941 = vmatpush.msra.mxu0 %v591
    %942 = vmatpush.msra.mxu0 %v589
    %943 = vmatmul.f32.gmra.mxu0 %v108
    %v944 = vpop.f32.mrf.mxu0
    %v945 = vadd.f32 %v925, %v944
    %946 = vdwg.mxu0
    %947 = vmatpush.msra.mxu0 %v140
    %948 = vmatpush.msra.mxu0 %v138
    %949 = vmatpush.msra.mxu0 %v136
    %950 = vmatpush.msra.mxu0 %v134
    %951 = vmatpush.msra.mxu0 %v132
    %952 = vmatpush.msra.mxu0 %v130
    %953 = vmatpush.msra.mxu0 %v128
    %954 = vmatpush.msra.mxu0 %v126
    %955 = vmatpush.msra.mxu0 %v124
    %956 = vmatpush.msra.mxu0 %v122
    %957 = vmatpush.msra.mxu0 %v120
    %958 = vmatpush.msra.mxu0 %v118
    %959 = vmatpush.msra.mxu0 %v116
    %960 = vmatpush.msra.mxu0 %v114
    %961 = vmatpush.msra.mxu0 %v112
    %962 = vmatpush.msra.mxu0 %v110
    %963 = vmatmul.f32.gmra.mxu0 %v93
    %v964 = vpop.f32.mrf.mxu0
    %v965 = vadd.f32 %v624, %v964
    %966 = vdwg.mxu0
    %967 = vmatpush.msra.mxu0 %v172
    %968 = vmatpush.msra.mxu0 %v170
    %969 = vmatpush.msra.mxu0 %v168
    %970 = vmatpush.msra.mxu0 %v166
    %971 = vmatpush.msra.mxu0 %v164
    %972 = vmatpush.msra.mxu0 %v162
    %973 = vmatpush.msra.mxu0 %v160
    %974 = vmatpush.msra.mxu0 %v158
    %975 = vmatpush.msra.mxu0 %v156
    %976 = vmatpush.msra.mxu0 %v154
    %977 = vmatpush.msra.mxu0 %v152
    %978 = vmatpush.msra.mxu0 %v150
    %979 = vmatpush.msra.mxu0 %v148
    %980 = vmatpush.msra.mxu0 %v146
    %981 = vmatpush.msra.mxu0 %v144
    %982 = vmatpush.msra.mxu0 %v142
    %983 = vmatmul.f32.gmra.mxu0 %v94
    %v984 = vpop.f32.mrf.mxu0
    %v985 = vadd.f32 %v965, %v984
    %986 = vdwg.mxu0
    %987 = vmatpush.msra.mxu0 %v204
    %988 = vmatpush.msra.mxu0 %v202
    %989 = vmatpush.msra.mxu0 %v200
    %990 = vmatpush.msra.mxu0 %v198
    %991 = vmatpush.msra.mxu0 %v196
    %992 = vmatpush.msra.mxu0 %v194
    %993 = vmatpush.msra.mxu0 %v192
    %994 = vmatpush.msra.mxu0 %v190
    %995 = vmatpush.msra.mxu0 %v188
    %996 = vmatpush.msra.mxu0 %v186
    %997 = vmatpush.msra.mxu0 %v184
    %998 = vmatpush.msra.mxu0 %v182
    %999 = vmatpush.msra.mxu0 %v180
    %1000 = vmatpush.msra.mxu0 %v178
    %1001 = vmatpush.msra.mxu0 %v176
    %1002 = vmatpush.msra.mxu0 %v174
    %1003 = vmatmul.f32.gmra.mxu0 %v95
    %v1004 = vpop.f32.mrf.mxu0
    %v1005 = vadd.f32 %v985, %v1004
    %1006 = vdwg.mxu0
    %1007 = vmatpush.msra.mxu0 %v236
    %1008 = vmatpush.msra.mxu0 %v234
    %1009 = vmatpush.msra.mxu0 %v232
    %1010 = vmatpush.msra.mxu0 %v230
    %1011 = vmatpush.msra.mxu0 %v228
    %1012 = vmatpush.msra.mxu0 %v226
    %1013 = vmatpush.msra.mxu0 %v224
    %1014 = vmatpush.msra.mxu0 %v222
    %1015 = vmatpush.msra.mxu0 %v220
    %1016 = vmatpush.msra.mxu0 %v218
    %1017 = vmatpush.msra.mxu0 %v216
    %1018 = vmatpush.msra.mxu0 %v214
    %1019 = vmatpush.msra.mxu0 %v212
    %1020 = vmatpush.msra.mxu0 %v210
    %1021 = vmatpush.msra.mxu0 %v208
    %1022 = vmatpush.msra.mxu0 %v206
    %1023 = vmatmul.f32.gmra.mxu0 %v96
    %v1024 = vpop.f32.mrf.mxu0
    %v1025 = vadd.f32 %v1005, %v1024
    %1026 = vdwg.mxu0
    %1027 = vmatpush.msra.mxu0 %v268
    %1028 = vmatpush.msra.mxu0 %v266
    %1029 = vmatpush.msra.mxu0 %v264
    %1030 = vmatpush.msra.mxu0 %v262
    %1031 = vmatpush.msra.mxu0 %v260
    %1032 = vmatpush.msra.mxu0 %v258
    %1033 = vmatpush.msra.mxu0 %v256
    %1034 = vmatpush.msra.mxu0 %v254
    %1035 = vmatpush.msra.mxu0 %v252
    %1036 = vmatpush.msra.mxu0 %v250
    %1037 = vmatpush.msra.mxu0 %v248
    %1038 = vmatpush.msra.mxu0 %v246
    %1039 = vmatpush.msra.mxu0 %v244
    %1040 = vmatpush.msra.mxu0 %v242
    %1041 = vmatpush.msra.mxu0 %v240
    %1042 = vmatpush.msra.mxu0 %v238
    %1043 = vmatmul.f32.gmra.mxu0 %v97
    %v1044 = vpop.f32.mrf.mxu0
    %v1045 = vadd.f32 %v1025, %v1044
    %1046 = vdwg.mxu0
    %1047 = vmatpush.msra.mxu0 %v300
    %1048 = vmatpush.msra.mxu0 %v298
    %1049 = vmatpush.msra.mxu0 %v296
    %1050 = vmatpush.msra.mxu0 %v294
    %1051 = vmatpush.msra.mxu0 %v292
    %1052 = vmatpush.msra.mxu0 %v290
    %1053 = vmatpush.msra.mxu0 %v288
    %1054 = vmatpush.msra.mxu0 %v286
    %1055 = vmatpush.msra.mxu0 %v284
    %1056 = vmatpush.msra.mxu0 %v282
    %1057 = vmatpush.msra.mxu0 %v280
    %1058 = vmatpush.msra.mxu0 %v278
    %1059 = vmatpush.msra.mxu0 %v276
    %1060 = vmatpush.msra.mxu0 %v274
    %1061 = vmatpush.msra.mxu0 %v272
    %1062 = vmatpush.msra.mxu0 %v270
    %1063 = vmatmul.f32.gmra.mxu0 %v98
    %v1064 = vpop.f32.mrf.mxu0
    %v1065 = vadd.f32 %v1045, %v1064
    %1066 = vdwg.mxu0
    %1067 = vmatpush.msra.mxu0 %v332
    %1068 = vmatpush.msra.mxu0 %v330
    %1069 = vmatpush.msra.mxu0 %v328
    %1070 = vmatpush.msra.mxu0 %v326
    %1071 = vmatpush.msra.mxu0 %v324
    %1072 = vmatpush.msra.mxu0 %v322
    %1073 = vmatpush.msra.mxu0 %v320
    %1074 = vmatpush.msra.mxu0 %v318
    %1075 = vmatpush.msra.mxu0 %v316
    %1076 = vmatpush.msra.mxu0 %v314
    %1077 = vmatpush.msra.mxu0 %v312
    %1078 = vmatpush.msra.mxu0 %v310
    %1079 = vmatpush.msra.mxu0 %v308
    %1080 = vmatpush.msra.mxu0 %v306
    %1081 = vmatpush.msra.mxu0 %v304
    %1082 = vmatpush.msra.mxu0 %v302
    %1083 = vmatmul.f32.gmra.mxu0 %v99
    %v1084 = vpop.f32.mrf.mxu0
    %v1085 = vadd.f32 %v1065, %v1084
    %1086 = vdwg.mxu0
    %1087 = vmatpush.msra.mxu0 %v364
    %1088 = vmatpush.msra.mxu0 %v362
    %1089 = vmatpush.msra.mxu0 %v360
    %1090 = vmatpush.msra.mxu0 %v358
    %1091 = vmatpush.msra.mxu0 %v356
    %1092 = vmatpush.msra.mxu0 %v354
    %1093 = vmatpush.msra.mxu0 %v352
    %1094 = vmatpush.msra.mxu0 %v350
    %1095 = vmatpush.msra.mxu0 %v348
    %1096 = vmatpush.msra.mxu0 %v346
    %1097 = vmatpush.msra.mxu0 %v344
    %1098 = vmatpush.msra.mxu0 %v342
    %1099 = vmatpush.msra.mxu0 %v340
    %1100 = vmatpush.msra.mxu0 %v338
    %1101 = vmatpush.msra.mxu0 %v336
    %1102 = vmatpush.msra.mxu0 %v334
    %1103 = vmatmul.f32.gmra.mxu0 %v100
    %v1104 = vpop.f32.mrf.mxu0
    %v1105 = vadd.f32 %v1085, %v1104
    %1106 = vdwg.mxu0
    %1107 = vmatpush.msra.mxu0 %v396
    %1108 = vmatpush.msra.mxu0 %v394
    %1109 = vmatpush.msra.mxu0 %v392
    %1110 = vmatpush.msra.mxu0 %v390
    %1111 = vmatpush.msra.mxu0 %v388
    %1112 = vmatpush.msra.mxu0 %v386
    %1113 = vmatpush.msra.mxu0 %v384
    %1114 = vmatpush.msra.mxu0 %v382
    %1115 = vmatpush.msra.mxu0 %v380
    %1116 = vmatpush.msra.mxu0 %v378
    %1117 = vmatpush.msra.mxu0 %v376
    %1118 = vmatpush.msra.mxu0 %v374
    %1119 = vmatpush.msra.mxu0 %v372
    %1120 = vmatpush.msra.mxu0 %v370
    %1121 = vmatpush.msra.mxu0 %v368
    %1122 = vmatpush.msra.mxu0 %v366
    %1123 = vmatmul.f32.gmra.mxu0 %v101
    %v1124 = vpop.f32.mrf.mxu0
    %v1125 = vadd.f32 %v1105, %v1124
    %1126 = vdwg.mxu0
    %1127 = vmatpush.msra.mxu0 %v428
    %1128 = vmatpush.msra.mxu0 %v426
    %1129 = vmatpush.msra.mxu0 %v424
    %1130 = vmatpush.msra.mxu0 %v422
    %1131 = vmatpush.msra.mxu0 %v420
    %1132 = vmatpush.msra.mxu0 %v418
    %1133 = vmatpush.msra.mxu0 %v416
    %1134 = vmatpush.msra.mxu0 %v414
    %1135 = vmatpush.msra.mxu0 %v412
    %1136 = vmatpush.msra.mxu0 %v410
    %1137 = vmatpush.msra.mxu0 %v408
    %1138 = vmatpush.msra.mxu0 %v406
    %1139 = vmatpush.msra.mxu0 %v404
    %1140 = vmatpush.msra.mxu0 %v402
    %1141 = vmatpush.msra.mxu0 %v400
    %1142 = vmatpush.msra.mxu0 %v398
    %1143 = vmatmul.f32.gmra.mxu0 %v102
    %v1144 = vpop.f32.mrf.mxu0
    %v1145 = vadd.f32 %v1125, %v1144
    %1146 = vdwg.mxu0
    %1147 = vmatpush.msra.mxu0 %v460
    %1148 = vmatpush.msra.mxu0 %v458
    %1149 = vmatpush.msra.mxu0 %v456
    %1150 = vmatpush.msra.mxu0 %v454
    %1151 = vmatpush.msra.mxu0 %v452
    %1152 = vmatpush.msra.mxu0 %v450
    %1153 = vmatpush.msra.mxu0 %v448
    %1154 = vmatpush.msra.mxu0 %v446
    %1155 = vmatpush.msra.mxu0 %v444
    %1156 = vmatpush.msra.mxu0 %v442
    %1157 = vmatpush.msra.mxu0 %v440
    %1158 = vmatpush.msra.mxu0 %v438
    %1159 = vmatpush.msra.mxu0 %v436
    %1160 = vmatpush.msra.mxu0 %v434
    %1161 = vmatpush.msra.mxu0 %v432
    %1162 = vmatpush.msra.mxu0 %v430
    %1163 = vmatmul.f32.gmra.mxu0 %v103
    %v1164 = vpop.f32.mrf.mxu0
    %v1165 = vadd.f32 %v1145, %v1164
    %1166 = vdwg.mxu0
    %1167 = vmatpush.msra.mxu0 %v492
    %1168 = vmatpush.msra.mxu0 %v490
    %1169 = vmatpush.msra.mxu0 %v488
    %1170 = vmatpush.msra.mxu0 %v486
    %1171 = vmatpush.msra.mxu0 %v484
    %1172 = vmatpush.msra.mxu0 %v482
    %1173 = vmatpush.msra.mxu0 %v480
    %1174 = vmatpush.msra.mxu0 %v478
    %1175 = vmatpush.msra.mxu0 %v476
    %1176 = vmatpush.msra.mxu0 %v474
    %1177 = vmatpush.msra.mxu0 %v472
    %1178 = vmatpush.msra.mxu0 %v470
    %1179 = vmatpush.msra.mxu0 %v468
    %1180 = vmatpush.msra.mxu0 %v466
    %1181 = vmatpush.msra.mxu0 %v464
    %1182 = vmatpush.msra.mxu0 %v462
    %1183 = vmatmul.f32.gmra.mxu0 %v104
    %v1184 = vpop.f32.mrf.mxu0
    %v1185 = vadd.f32 %v1165, %v1184
    %1186 = vdwg.mxu0
    %1187 = vmatpush.msra.mxu0 %v524
    %1188 = vmatpush.msra.mxu0 %v522
    %1189 = vmatpush.msra.mxu0 %v520
    %1190 = vmatpush.msra.mxu0 %v518
    %1191 = vmatpush.msra.mxu0 %v516
    %1192 = vmatpush.msra.mxu0 %v514
    %1193 = vmatpush.msra.mxu0 %v512
    %1194 = vmatpush.msra.mxu0 %v510
    %1195 = vmatpush.msra.mxu0 %v508
    %1196 = vmatpush.msra.mxu0 %v506
    %1197 = vmatpush.msra.mxu0 %v504
    %1198 = vmatpush.msra.mxu0 %v502
    %1199 = vmatpush.msra.mxu0 %v500
    %1200 = vmatpush.msra.mxu0 %v498
    %1201 = vmatpush.msra.mxu0 %v496
    %1202 = vmatpush.msra.mxu0 %v494
    %1203 = vmatmul.f32.gmra.mxu0 %v105
    %v1204 = vpop.f32.mrf.mxu0
    %v1205 = vadd.f32 %v1185, %v1204
    %1206 = vdwg.mxu0
    %1207 = vmatpush.msra.mxu0 %v556
    %1208 = vmatpush.msra.mxu0 %v554
    %1209 = vmatpush.msra.mxu0 %v552
    %1210 = vmatpush.msra.mxu0 %v550
    %1211 = vmatpush.msra.mxu0 %v548
    %1212 = vmatpush.msra.mxu0 %v546
    %1213 = vmatpush.msra.mxu0 %v544
    %1214 = vmatpush.msra.mxu0 %v542
    %1215 = vmatpush.msra.mxu0 %v540
    %1216 = vmatpush.msra.mxu0 %v538
    %1217 = vmatpush.msra.mxu0 %v536
    %1218 = vmatpush.msra.mxu0 %v534
    %1219 = vmatpush.msra.mxu0 %v532
    %1220 = vmatpush.msra.mxu0 %v530
    %1221 = vmatpush.msra.mxu0 %v528
    %1222 = vmatpush.msra.mxu0 %v526
    %1223 = vmatmul.f32.gmra.mxu0 %v106
    %v1224 = vpop.f32.mrf.mxu0
    %v1225 = vadd.f32 %v1205, %v1224
    %1226 = vdwg.mxu0
    %1227 = vmatpush.msra.mxu0 %v588
    %1228 = vmatpush.msra.mxu0 %v586
    %1229 = vmatpush.msra.mxu0 %v584
    %1230 = vmatpush.msra.mxu0 %v582
    %1231 = vmatpush.msra.mxu0 %v580
    %1232 = vmatpush.msra.mxu0 %v578
    %1233 = vmatpush.msra.mxu0 %v576
    %1234 = vmatpush.msra.mxu0 %v574
    %1235 = vmatpush.msra.mxu0 %v572
    %1236 = vmatpush.msra.mxu0 %v570
    %1237 = vmatpush.msra.mxu0 %v568
    %1238 = vmatpush.msra.mxu0 %v566
    %1239 = vmatpush.msra.mxu0 %v564
    %1240 = vmatpush.msra.mxu0 %v562
    %1241 = vmatpush.msra.mxu0 %v560
    %1242 = vmatpush.msra.mxu0 %v558
    %1243 = vmatmul.f32.gmra.mxu0 %v107
    %v1244 = vpop.f32.mrf.mxu0
    %v1245 = vadd.f32 %v1225, %v1244
    %1246 = vdwg.mxu0
    %1247 = vmatpush.msra.mxu0 %v620
    %1248 = vmatpush.msra.mxu0 %v618
    %1249 = vmatpush.msra.mxu0 %v616
    %1250 = vmatpush.msra.mxu0 %v614
    %1251 = vmatpush.msra.mxu0 %v612
    %1252 = vmatpush.msra.mxu0 %v610
    %1253 = vmatpush.msra.mxu0 %v608
    %1254 = vmatpush.msra.mxu0 %v606
    %1255 = vmatpush.msra.mxu0 %v604
    %1256 = vmatpush.msra.mxu0 %v602
    %1257 = vmatpush.msra.mxu0 %v600
    %1258 = vmatpush.msra.mxu0 %v598
    %1259 = vmatpush.msra.mxu0 %v596
    %1260 = vmatpush.msra.mxu0 %v594
    %1261 = vmatpush.msra.mxu0 %v592
    %1262 = vmatpush.msra.mxu0 %v590
    %1263 = vmatmul.f32.gmra.mxu0 %v108
    %v1264 = vpop.f32.mrf.mxu0
    %v1265 = vadd.f32 %v1245, %v1264
    %1266 = vdwg.mxu0
    %v1267 = vmax.f32 %v945, 0.0
    %v1268 = vmax.f32 %v1265, 0.0
    %v1269 = vld [vmem:[#allocation8] sm:$0xff]
    %v1270 = vld [vmem:[#allocation8 + $0x8] sm:$0xff]
    %v1271 = vld [vmem:[#allocation8 + $0x10] sm:$0xff]
    %v1272 = vld [vmem:[#allocation8 + $0x18] sm:$0xff]
    %v1273 = vld [vmem:[#allocation8 + $0x20] sm:$0xff]
    %v1274 = vld [vmem:[#allocation8 + $0x28] sm:$0xff]
    %v1275 = vld [vmem:[#allocation8 + $0x30] sm:$0xff]
    %v1276 = vld [vmem:[#allocation8 + $0x38] sm:$0xff]
    %v1277 = vld [vmem:[#allocation8 + $0x40] sm:$0xff]
    %v1278 = vld [vmem:[#allocation8 + $0x48] sm:$0xff]
    %v1279 = vld [vmem:[#allocation8 + $0x50] sm:$0xff]
    %v1280 = vld [vmem:[#allocation8 + $0x58] sm:$0xff]
    %v1281 = vld [vmem:[#allocation8 + $0x60] sm:$0xff]
    %v1282 = vld [vmem:[#allocation8 + $0x68] sm:$0xff]
    %v1283 = vld [vmem:[#allocation8 + $0x70] sm:$0xff]
    %v1284 = vld [vmem:[#allocation8 + $0x78] sm:$0xff]
    %v1285 = vld [vmem:[#allocation8 + $0x80] sm:$0xff]
    %v1286 = vld [vmem:[#allocation8 + $0x88] sm:$0xff]
    %v1287 = vld [vmem:[#allocation8 + $0x90] sm:$0xff]
    %v1288 = vld [vmem:[#allocation8 + $0x98] sm:$0xff]
    %v1289 = vld [vmem:[#allocation8 + $0xa0] sm:$0xff]
    %v1290 = vld [vmem:[#allocation8 + $0xa8] sm:$0xff]
    %v1291 = vld [vmem:[#allocation8 + $0xb0] sm:$0xff]
    %v1292 = vld [vmem:[#allocation8 + $0xb8] sm:$0xff]
    %v1293 = vld [vmem:[#allocation8 + $0xc0] sm:$0xff]
    %v1294 = vld [vmem:[#allocation8 + $0xc8] sm:$0xff]
    %v1295 = vld [vmem:[#allocation8 + $0xd0] sm:$0xff]
    %v1296 = vld [vmem:[#allocation8 + $0xd8] sm:$0xff]
    %v1297 = vld [vmem:[#allocation8 + $0xe0] sm:$0xff]
    %v1298 = vld [vmem:[#allocation8 + $0xe8] sm:$0xff]
    %v1299 = vld [vmem:[#allocation8 + $0xf0] sm:$0xff]
    %v1300 = vld [vmem:[#allocation8 + $0xf8] sm:$0xff]
    %v1301 = vld [vmem:[#allocation10] sm:$0x1]
    %v1303 = vperm.slane %v1301, 0
    %1305 = vmatpush.msra.mxu0 %v1284
    %1306 = vmatpush.msra.mxu0 %v1283
    %1307 = vmatpush.msra.mxu0 %v1282
    %1308 = vmatpush.msra.mxu0 %v1281
    %1309 = vmatpush.msra.mxu0 %v1280
    %1310 = vmatpush.msra.mxu0 %v1279
    %1311 = vmatpush.msra.mxu0 %v1278
    %1312 = vmatpush.msra.mxu0 %v1277
    %1313 = vmatpush.msra.mxu0 %v1276
    %1314 = vmatpush.msra.mxu0 %v1275
    %1315 = vmatpush.msra.mxu0 %v1274
    %1316 = vmatpush.msra.mxu0 %v1273
    %1317 = vmatpush.msra.mxu0 %v1272
    %1318 = vmatpush.msra.mxu0 %v1271
    %1319 = vmatpush.msra.mxu0 %v1270
    %1320 = vmatpush.msra.mxu0 %v1269
    %1321 = vmatmul.f32.gmra.mxu0 %v1267
    %v1322 = vpop.f32.mrf.mxu0
    %v1323 = vadd.f32 %v1303, %v1322
    %1324 = vdwg.mxu0
    %1325 = vmatpush.msra.mxu0 %v1300
    %1326 = vmatpush.msra.mxu0 %v1299
    %1327 = vmatpush.msra.mxu0 %v1298
    %1328 = vmatpush.msra.mxu0 %v1297
    %1329 = vmatpush.msra.mxu0 %v1296
    %1330 = vmatpush.msra.mxu0 %v1295
    %1331 = vmatpush.msra.mxu0 %v1294
    %1332 = vmatpush.msra.mxu0 %v1293
    %1333 = vmatpush.msra.mxu0 %v1292
    %1334 = vmatpush.msra.mxu0 %v1291
    %1335 = vmatpush.msra.mxu0 %v1290
    %1336 = vmatpush.msra.mxu0 %v1289
    %1337 = vmatpush.msra.mxu0 %v1288
    %1338 = vmatpush.msra.mxu0 %v1287
    %1339 = vmatpush.msra.mxu0 %v1286
    %1340 = vmatpush.msra.mxu0 %v1285
    %1341 = vmatmul.f32.gmra.mxu0 %v1268
    %v1342 = vpop.f32.mrf.mxu0
    %v1343 = vadd.f32 %v1323, %v1342
    %1344 = vdwg.mxu0
    %1345 = vst [vmem:[#allocation11] sm:$0xff] %v1343
    // Predicated region
    $region42: #{tpu_custom_call.1} parent=1 // pred_check
      _
    $region43: #{tpu_custom_call.1} parent=1 // pred_check_branch
      %1347 = sbr.rel (0) target = $region45
    $region44: #{tpu_custom_call.1} parent=1 // pred_region
      %1349 = vsyncadd [#allocation4], 0
      %s1351 = sshll.u32 [#allocation11], 4
      %s1352 = int_to_ptr.vmem [resolvable:$true] %s1351
      %s1353 = sshll.u32 %s5, 4
      %s1354 = int_to_ptr.hbm [resolvable:$true] %s1353
      %1356 = dma.vmem_to_hbm [thread:$0]  %s1352, 128, %s1354, [#allocation4]
    $region45: #{tpu_custom_call.1} parent=1 // pred_fallthru
      _
    // Predicated region
    $region46: #{tpu_custom_call.1} parent=1 // pred_check
      _
    $region47: #{tpu_custom_call.1} parent=1 // pred_check_branch
      %1358 = sbr.rel (0) target = $region49
    $region48: #{tpu_custom_call.1} parent=1 // pred_region
      %1360 = dma.done [#allocation4], 128
    $region49: #{tpu_custom_call.1} parent=1 // pred_fallthru
      _
    %1361 = vsyncpa [#allocation3], 1
    %1362 = vsyncpa [#allocation6], 1
    %1363 = vsyncpa [#allocation9], 1
    %1364 = vsyncpa [#allocation4], 1

</llo_original>
